<compile_context>
chip_gen: v5e
topology: v5e:2x2
jax: 0.10.0
libtpu: 0.0.40
codegen_flags: <defaults>
</compile_context>

<pallas_src>
import functools
import math

import jax
import jax.numpy as jnp
from jax.experimental import pallas as pl
from jax.experimental.pallas import tpu as pltpu

EPS = 1e-5  # nn.LayerNorm default


# --------------------------------------------------------------------------- #
# helpers
# --------------------------------------------------------------------------- #
def _layernorm(h, gamma, beta):
    mean = jnp.mean(h, axis=-1, keepdims=True)
    var = jnp.mean((h - mean) ** 2, axis=-1, keepdims=True)
    return (h - mean) * jax.lax.rsqrt(var + EPS) * gamma + beta


def _vmem_budget_bytes():
    """Per-core VMEM budget, clamped to real hardware (64 MiB on v7x)."""
    cap = 64 * 1024 * 1024  # conservative default if query fails
    try:
        info = pltpu.get_tpu_info()
        cap = int(getattr(info, "vmem_capacity_bytes", cap))
    except Exception:
        pass
    # leave ~25% headroom for compiler-internal scratch
    return max(16 * 1024 * 1024, (cap * 3) // 4)


def _main_live_bytes(tq, S, E, H, F):
    """Rough live-set estimate (bytes) of the main fused kernel for tile tq."""
    D = E // H
    weights = 2 * (2 * E * E + 2 * E * F)                 # bf16, single-buffered
    kv = 2 * (2 * 2 * H * D * S)                          # K,V bf16, double-buffered
    stream = 2 * (4 * tq * E + 2 * tq * S + 4 * tq * E)   # x, bias, out (double-buffered)
    interm = 4 * (2 * H * tq * S + tq * F + 6 * tq * E)   # scores+p, ff, residual/LN temps
    return weights + kv + stream + interm


def _pick_tq(S, E, H, F, budget):
    """Largest q-tile (fewest grid steps) whose live set fits the VMEM budget."""
    candidates = [t for t in (512, 256, 128, 64, 32, 16, 8) if t <= S and S % t == 0]
    if not candidates:
        return S  # tiny / irregular S: single full-S tile
    for t in candidates:
        if _main_live_bytes(t, S, E, H, F) <= budget:
            return t
    # TODO(synk): if even the smallest tile overflows, an online-softmax KV loop is needed.
    return candidates[-1]


def _const_spec(shape, single_buffer):
    """BlockSpec for a grid-constant (weight/bias/LN) operand."""
    zeros = (0,) * len(shape)
    index_map = lambda *_: zeros
    if single_buffer:
        # constant index map -> fetched once; single buffer halves resident VMEM
        return pl.BlockSpec(shape, index_map, pipeline_mode=pl.Buffered(1))
    return pl.BlockSpec(shape, index_map)


def _call_with_fallback(build, args):
    """Prefer single-buffered constant blocks; fall back if unsupported."""
    try:
        return build(True)(*args)
    except Exception:
        return build(False)(*args)


# --------------------------------------------------------------------------- #
# kernels
# --------------------------------------------------------------------------- #
def kv_projection_kernel(num_heads, x_ref, wkv_ref, bkv_ref, k_ref, v_ref):
    S, E = x_ref.shape[1], x_ref.shape[2]
    H = num_heads
    D = E // H

    x_bf = x_ref[0].astype(jnp.bfloat16)                                # (S, E)
    kv = jnp.dot(x_bf, wkv_ref[...],
                 preferred_element_type=jnp.float32) + bkv_ref[...]     # (S, 2E) f32
    kv_bf = kv.astype(jnp.bfloat16)
    k = kv_bf[:, :E].reshape(S, H, D)
    v = kv_bf[:, E:].reshape(S, H, D)
    # head-major; K additionally stored (D, S) so the QK^T matmul consumes it in
    # natural layout and the scores output is lane-dense in S.
    k_ref[0] = jnp.transpose(k, (1, 2, 0))                              # (H, D, S)
    v_ref[0] = jnp.transpose(v, (1, 0, 2))                              # (H, S, D)


def transformer_layer_kernel(num_heads,
                             x_ref, bias_ref, k_ref, v_ref,
                             wq_ref, bq_ref, wo_ref, bo_ref,
                             ln1_g_ref, ln1_b_ref,
                             w1_ref, b1_ref, w2_ref, b2_ref,
                             ln2_g_ref, ln2_b_ref,
                             out_ref):
    TQ, E = x_ref.shape[1], x_ref.shape[2]
    H = num_heads
    D = E // H

    x_q = x_ref[0]                                                      # (TQ, E) f32 residual

    # --- Q projection (1/sqrt(D) pre-folded into wq/bq) ----------------------
    q = jnp.dot(x_q.astype(jnp.bfloat16), wq_ref[...],
                preferred_element_type=jnp.float32) + bq_ref[...]       # (TQ, E) f32
    # explicit head-major transpose keeps leading batch dims (canonical
    # batched dot_general form for Mosaic)
    q_h = jnp.transpose(q.astype(jnp.bfloat16).reshape(TQ, H, D),
                        (1, 0, 2))                                      # (H, TQ, D) bf16

    k_h = k_ref[0]                                                      # (H, D, S) bf16
    v_h = v_ref[0]                                                      # (H, S, D) bf16

    # --- attention (head-batched, additive bf16 mask bias) -------------------
    scores = jnp.einsum('hqd,hdk->hqk', q_h, k_h,
                        preferred_element_type=jnp.float32)             # (H, TQ, S) f32
    scores = scores + bias_ref[...].astype(jnp.float32)                 # (1, TQ, S) broadcast

    m = jnp.max(scores, axis=-1, keepdims=True)
    p = jnp.exp(scores - m)
    denom = jnp.sum(p, axis=-1, keepdims=True)
    attn = p * pl.reciprocal(denom, approx=True)  # EUP slot; ~1e-3 rel err vs exact div

    # ctx produced directly in (TQ, H, D) order -> single reshape to (TQ, E)
    ctx = jnp.einsum('hqk,hkd->qhd', attn.astype(jnp.bfloat16), v_h,
                     preferred_element_type=jnp.float32)                # (TQ, H, D)
    ctx = ctx.reshape(TQ, E)

    attn_out = jnp.dot(ctx.astype(jnp.bfloat16), wo_ref[...],
                       preferred_element_type=jnp.float32) + bo_ref[...]

    # --- residual + first LayerNorm ------------------------------------------
    h1 = _layernorm(attn_out + x_q, ln1_g_ref[...], ln1_b_ref[...])

    # --- feedforward: Linear -> ReLU -> [Dropout] -> Linear -> [Dropout] ------
    ff = jnp.dot(h1.astype(jnp.bfloat16), w1_ref[...],
                 preferred_element_type=jnp.float32) + b1_ref[...]
    ff = jnp.maximum(ff, 0.0)
    ff = jnp.dot(ff.astype(jnp.bfloat16), w2_ref[...],
                 preferred_element_type=jnp.float32) + b2_ref[...]

    # --- residual + second LayerNorm ------------------------------------------
    h2 = _layernorm(h1 + ff, ln2_g_ref[...], ln2_b_ref[...])
    out_ref[0] = h2.astype(out_ref.dtype)


# --------------------------------------------------------------------------- #
# wrappers
# --------------------------------------------------------------------------- #
def prepare_params(params, *, num_heads):
    """One-time weight prep: bf16 matmul weights, fused wk/wv, 1/sqrt(D) fold."""
    E = params["wq"].shape[0]
    scale = 1.0 / math.sqrt(E // num_heads)
    return {
        "wq": (params["wq"] * scale).astype(jnp.bfloat16),
        "bq": params["bq"] * scale,
        "wkv": jnp.concatenate([params["wk"], params["wv"]], axis=1).astype(jnp.bfloat16),
        "bkv": jnp.concatenate([params["bk"], params["bv"]], axis=1),
        "wo": params["wo"].astype(jnp.bfloat16),
        "bo": params["bo"],
        "ln1_g": params["ln1_g"], "ln1_b": params["ln1_b"],
        "w1": params["w1"].astype(jnp.bfloat16), "b1": params["b1"],
        "w2": params["w2"].astype(jnp.bfloat16), "b2": params["b2"],
        "ln2_g": params["ln2_g"], "ln2_b": params["ln2_b"],
    }


def prepare_mask_bias(mask):
    """0/1 attend-mask -> bf16 additive bias (0 keep / ~-1e9 masked). Call once per mask."""
    return ((mask - 1.0) * 1e9).astype(jnp.bfloat16)


def _kv_projection(x, prepared, *, num_heads, budget):
    B, S, E = x.shape
    H, D = num_heads, E // num_heads

    est = (2 * E * 2 * E                      # wkv bf16 (single-buffered)
           + 2 * 4 * S * E                    # x block f32, double-buffered
           + 2 * (2 * 2 * H * D * S)          # k/v outputs bf16, double-buffered
           + 4 * S * 2 * E + 2 * S * 2 * E)   # kv f32 + bf16 intermediates
    vmem_limit = int(min(budget, max(16 * 1024 * 1024, 2 * est)))

    kernel = functools.partial(kv_projection_kernel, H)

    def build(single_buffer):
        in_specs = [
            pl.BlockSpec((1, S, E), lambda b: (b, 0, 0)),
            _const_spec((E, 2 * E), single_buffer),
            _const_spec((1, 2 * E), single_buffer),
        ]
        out_specs = [
            pl.BlockSpec((1, H, D, S), lambda b: (b, 0, 0, 0)),
            pl.BlockSpec((1, H, S, D), lambda b: (b, 0, 0, 0)),
        ]
        return pl.pallas_call(
            kernel,
            out_shape=(jax.ShapeDtypeStruct((B, H, D, S), jnp.bfloat16),
                       jax.ShapeDtypeStruct((B, H, S, D), jnp.bfloat16)),
            grid=(B,),
            in_specs=in_specs,
            out_specs=out_specs,
            compiler_params=pltpu.CompilerParams(
                dimension_semantics=("parallel",),
                vmem_limit_bytes=vmem_limit),
        )

    return _call_with_fallback(build, (x, prepared["wkv"], prepared["bkv"]))


def _fused_attention_ffn(x, mask_bias, k_hm, v_hm, prepared, *, num_heads, budget):
    B, S, E = x.shape
    H, D = num_heads, E // num_heads
    F = prepared["w1"].shape[1]

    TQ = _pick_tq(S, E, H, F, budget)
    NQ = S // TQ

    est = _main_live_bytes(TQ, S, E, H, F)
    vmem_limit = int(min(budget, max(32 * 1024 * 1024, 2 * est)))

    kernel = functools.partial(transformer_layer_kernel, H)

    def build(single_buffer):
        cs = lambda shape: _const_spec(shape, single_buffer)
        in_specs = [
            pl.BlockSpec((1, TQ, E), lambda b, q: (b, q, 0)),       # x q-tile (residual)
            pl.BlockSpec((1, TQ, S), lambda b, q: (b, q, 0)),       # additive mask bias (bf16)
            pl.BlockSpec((1, H, D, S), lambda b, q: (b, 0, 0, 0)),  # K head-major
            pl.BlockSpec((1, H, S, D), lambda b, q: (b, 0, 0, 0)),  # V head-major
            cs((E, E)), cs((1, E)),        # wq (scale folded), bq
            cs((E, E)), cs((1, E)),        # wo, bo
            cs((1, E)), cs((1, E)),        # ln1 gamma/beta
            cs((E, F)), cs((1, F)),        # w1, b1
            cs((F, E)), cs((1, E)),        # w2, b2
            cs((1, E)), cs((1, E)),        # ln2 gamma/beta
        ]
        out_specs = pl.BlockSpec((1, TQ, E), lambda b, q: (b, q, 0))
        return pl.pallas_call(
            kernel,
            out_shape=jax.ShapeDtypeStruct((B, S, E), x.dtype),
            grid=(B, NQ),
            in_specs=in_specs,
            out_specs=out_specs,
            compiler_params=pltpu.CompilerParams(
                dimension_semantics=("parallel", "parallel"),
                vmem_limit_bytes=vmem_limit),
        )

    args = (x, mask_bias, k_hm, v_hm,
            prepared["wq"], prepared["bq"], prepared["wo"], prepared["bo"],
            prepared["ln1_g"], prepared["ln1_b"],
            prepared["w1"], prepared["b1"], prepared["w2"], prepared["b2"],
            prepared["ln2_g"], prepared["ln2_b"])
    return _call_with_fallback(build, args)


def transformer_layer(x, mask_bias, prepared, *, num_heads):
    """x: (B,S,E) f32; mask_bias: (B,S,S) bf16 additive bias from prepare_mask_bias."""
    budget = _vmem_budget_bytes()
    k_hm, v_hm = _kv_projection(x, prepared, num_heads=num_heads, budget=budget)
    return _fused_attention_ffn(x, mask_bias, k_hm, v_hm, prepared,
                                num_heads=num_heads, budget=budget)


def init_params(key, embed_dim, ff_dim):
    keys = jax.random.split(key, 6)
    scale = 0.02
    return {
        "wq": jax.random.normal(keys[0], (embed_dim, embed_dim), jnp.float32) * scale,
        "wk": jax.random.normal(keys[1], (embed_dim, embed_dim), jnp.float32) * scale,
        "wv": jax.random.normal(keys[2], (embed_dim, embed_dim), jnp.float32) * scale,
        "wo": jax.random.normal(keys[3], (embed_dim, embed_dim), jnp.float32) * scale,
        "bq": jnp.zeros((1, embed_dim), jnp.float32),
        "bk": jnp.zeros((1, embed_dim), jnp.float32),
        "bv": jnp.zeros((1, embed_dim), jnp.float32),
        "bo": jnp.zeros((1, embed_dim), jnp.float32),
        "ln1_g": jnp.ones((1, embed_dim), jnp.float32),
        "ln1_b": jnp.zeros((1, embed_dim), jnp.float32),
        "w1": jax.random.normal(keys[4], (embed_dim, ff_dim), jnp.float32) * scale,
        "b1": jnp.zeros((1, ff_dim), jnp.float32),
        "w2": jax.random.normal(keys[5], (ff_dim, embed_dim), jnp.float32) * scale,
        "b2": jnp.zeros((1, embed_dim), jnp.float32),
        "ln2_g": jnp.ones((1, embed_dim), jnp.float32),
        "ln2_b": jnp.zeros((1, embed_dim), jnp.float32),
    }


if __name__ == "__main__":
    batch, seq, embed_dim, ff_dim, num_heads = 2, 8, 32, 64, 4

    key = jax.random.PRNGKey(0)
    kx, kp = jax.random.split(key)

    x = jax.random.normal(kx, (batch, seq, embed_dim), jnp.float32)
    # causal mask: 1.0 = attend, 0.0 = masked
    causal = jnp.tril(jnp.ones((seq, seq), jnp.float32))
    mask = jnp.broadcast_to(causal, (batch, seq, seq))

    params = init_params(kp, embed_dim, ff_dim)

    # one-time prep (hoisted out of the per-call path)
    prepared = prepare_params(params, num_heads=num_heads)
    mask_bias = prepare_mask_bias(mask)

    out = transformer_layer(x, mask_bias, prepared, num_heads=num_heads)
    jax.block_until_ready(out)
    assert out.shape == (batch, seq, embed_dim)
    assert bool(jnp.all(jnp.isfinite(out)))
    print("KERNEL_OK")
</pallas_src>

<mosaic_0001>
module attributes {stable_mosaic.version = 11 : i64} {
  func.func @kv_projection_kernel(%arg0: i32, %arg1: memref<1x8x32xf32, #tpu.memory_space<vmem>>, %arg2: memref<32x64xbf16, #tpu.memory_space<vmem>>, %arg3: memref<1x64xf32, #tpu.memory_space<vmem>>, %arg4: memref<1x4x8x8xbf16, #tpu.memory_space<vmem>>, %arg5: memref<1x4x8x8xbf16, #tpu.memory_space<vmem>>) attributes {dimension_semantics = [#tpu.dimension_semantics<parallel>], iteration_bounds = array<i64: 2>, scalar_prefetch = 0 : i64, scratch_operands = 0 : i64, tpu.core_type = #tpu.core_type<tc>, window_params = [{transform_indices = @transform_0, window_bounds = array<i64: 1, 8, 32>}, {pipeline_mode = #tpu.pipeline_mode<synchronous>, transform_indices = @transform_1, window_bounds = array<i64: 32, 64>}, {pipeline_mode = #tpu.pipeline_mode<synchronous>, transform_indices = @transform_2, window_bounds = array<i64: 1, 64>}, {transform_indices = @transform_3, window_bounds = array<i64: 1, 4, 8, 8>}, {transform_indices = @transform_4, window_bounds = array<i64: 1, 4, 8, 8>}]} {
    %c0 = arith.constant 0 : index
    %c0_0 = arith.constant 0 : index
    %c0_1 = arith.constant 0 : index
    %0 = vector.load %arg1[%c0, %c0_0, %c0_1] : memref<1x8x32xf32, #tpu.memory_space<vmem>>, vector<1x8x32xf32>
    %1 = vector.shape_cast %0 : vector<1x8x32xf32> to vector<8x32xf32>
    %2 = arith.truncf %1 : vector<8x32xf32> to vector<8x32xbf16>
    %c0_2 = arith.constant 0 : index
    %c0_3 = arith.constant 0 : index
    %3 = vector.load %arg2[%c0_2, %c0_3] : memref<32x64xbf16, #tpu.memory_space<vmem>>, vector<32x64xbf16>
    %cst = arith.constant dense<0.000000e+00> : vector<8x64xf32>
    %4 = tpu.matmul %2, %3, %cst {dimension_numbers = #tpu.dot_dimension_numbers<[1], [0], [0], [1], [0, 0, 1, 1], [], []>} : vector<8x32xbf16>, vector<32x64xbf16>, vector<8x64xf32> -> vector<8x64xf32>
    %c0_4 = arith.constant 0 : index
    %c0_5 = arith.constant 0 : index
    %5 = vector.load %arg3[%c0_4, %c0_5] : memref<1x64xf32, #tpu.memory_space<vmem>>, vector<1x64xf32>
    %6 = vector.broadcast %5 : vector<1x64xf32> to vector<8x64xf32>
    %7 = arith.addf %4, %6 : vector<8x64xf32>
    %8 = arith.truncf %7 : vector<8x64xf32> to vector<8x64xbf16>
    %9 = vector.extract_strided_slice %8 {offsets = [0, 0], sizes = [8, 32], strides = [1, 1]} : vector<8x64xbf16> to vector<8x32xbf16>
    %10 = vector.shape_cast %9 : vector<8x32xbf16> to vector<8x4x8xbf16>
    %11 = vector.extract_strided_slice %8 {offsets = [0, 32], sizes = [8, 32], strides = [1, 1]} : vector<8x64xbf16> to vector<8x32xbf16>
    %12 = vector.shape_cast %11 : vector<8x32xbf16> to vector<8x4x8xbf16>
    %13 = tpu.transpose %10, [1, 2, 0] : vector<8x4x8xbf16> -> vector<4x8x8xbf16>
    %c0_6 = arith.constant 0 : index
    %c0_7 = arith.constant 0 : index
    %c0_8 = arith.constant 0 : index
    %c0_9 = arith.constant 0 : index
    %14 = vector.load %arg4[%c0_6, %c0_7, %c0_8, %c0_9] : memref<1x4x8x8xbf16, #tpu.memory_space<vmem>>, vector<1x4x8x8xbf16>
    %15 = vector.shape_cast %14 : vector<1x4x8x8xbf16> to vector<4x8x8xbf16>
    %16 = vector.shape_cast %13 : vector<4x8x8xbf16> to vector<1x4x8x8xbf16>
    tpu.vector_store %arg4[%c0_6, %c0_7, %c0_8, %c0_9], %16 {strides = array<i32>} : memref<1x4x8x8xbf16, #tpu.memory_space<vmem>>, vector<1x4x8x8xbf16>,
    %17 = tpu.transpose %12, [1, 0, 2] : vector<8x4x8xbf16> -> vector<4x8x8xbf16>
    %c0_10 = arith.constant 0 : index
    %c0_11 = arith.constant 0 : index
    %c0_12 = arith.constant 0 : index
    %c0_13 = arith.constant 0 : index
    %18 = vector.load %arg5[%c0_10, %c0_11, %c0_12, %c0_13] : memref<1x4x8x8xbf16, #tpu.memory_space<vmem>>, vector<1x4x8x8xbf16>
    %19 = vector.shape_cast %18 : vector<1x4x8x8xbf16> to vector<4x8x8xbf16>
    %20 = vector.shape_cast %17 : vector<4x8x8xbf16> to vector<1x4x8x8xbf16>
    tpu.vector_store %arg5[%c0_10, %c0_11, %c0_12, %c0_13], %20 {strides = array<i32>} : memref<1x4x8x8xbf16, #tpu.memory_space<vmem>>, vector<1x4x8x8xbf16>,
    return
  }
  func.func @transform_0(%arg0: i32) -> (i32, i32, i32) {
    %c0_i32 = arith.constant 0 : i32
    %c0_i32_0 = arith.constant 0 : i32
    %c0_i32_1 = arith.constant 0 : i32
    return %arg0, %c0_i32, %c0_i32_0 : i32, i32, i32
  }
  func.func @transform_1(%arg0: i32) -> (i32, i32) {
    %c0_i32 = arith.constant 0 : i32
    %c0_i32_0 = arith.constant 0 : i32
    %c0_i32_1 = arith.constant 0 : i32
    return %c0_i32, %c0_i32_0 : i32, i32
  }
  func.func @transform_2(%arg0: i32) -> (i32, i32) {
    %c0_i32 = arith.constant 0 : i32
    %c0_i32_0 = arith.constant 0 : i32
    %c0_i32_1 = arith.constant 0 : i32
    return %c0_i32, %c0_i32_0 : i32, i32
  }
  func.func @transform_3(%arg0: i32) -> (i32, i32, i32, i32) {
    %c0_i32 = arith.constant 0 : i32
    %c0_i32_0 = arith.constant 0 : i32
    %c0_i32_1 = arith.constant 0 : i32
    %c0_i32_2 = arith.constant 0 : i32
    return %arg0, %c0_i32, %c0_i32_0, %c0_i32_1 : i32, i32, i32, i32
  }
  func.func @transform_4(%arg0: i32) -> (i32, i32, i32, i32) {
    %c0_i32 = arith.constant 0 : i32
    %c0_i32_0 = arith.constant 0 : i32
    %c0_i32_1 = arith.constant 0 : i32
    %c0_i32_2 = arith.constant 0 : i32
    return %arg0, %c0_i32, %c0_i32_0, %c0_i32_1 : i32, i32, i32, i32
  }
}

module attributes {stable_mosaic.version = 11 : i64} {
  func.func @kv_projection_kernel(%arg0: i32, %arg1: memref<1x8x32xf32, #tpu.memory_space<vmem>>, %arg2: memref<32x64xbf16, #tpu.memory_space<vmem>>, %arg3: memref<1x64xf32, #tpu.memory_space<vmem>>, %arg4: memref<1x4x8x8xbf16, #tpu.memory_space<vmem>>, %arg5: memref<1x4x8x8xbf16, #tpu.memory_space<vmem>>) attributes {dimension_semantics = [#tpu.dimension_semantics<parallel>], iteration_bounds = array<i64: 2>, scalar_prefetch = 0 : i64, scratch_operands = 0 : i64, tpu.core_type = #tpu.core_type<tc>, window_params = [{transform_indices = @transform_0, window_bounds = array<i64: 1, 8, 32>}, {pipeline_mode = #tpu.pipeline_mode<synchronous>, transform_indices = @transform_1, window_bounds = array<i64: 32, 64>}, {pipeline_mode = #tpu.pipeline_mode<synchronous>, transform_indices = @transform_2, window_bounds = array<i64: 1, 64>}, {transform_indices = @transform_3, window_bounds = array<i64: 1, 4, 8, 8>}, {transform_indices = @transform_4, window_bounds = array<i64: 1, 4, 8, 8>}]} {
    %c0 = arith.constant 0 : index
    %c0_0 = arith.constant 0 : index
    %c0_1 = arith.constant 0 : index
    %0 = vector.load %arg1[%c0, %c0_0, %c0_1] : memref<1x8x32xf32, #tpu.memory_space<vmem>>, vector<1x8x32xf32>
    %1 = vector.shape_cast %0 : vector<1x8x32xf32> to vector<8x32xf32>
    %2 = arith.truncf %1 : vector<8x32xf32> to vector<8x32xbf16>
    %c0_2 = arith.constant 0 : index
    %c0_3 = arith.constant 0 : index
    %3 = vector.load %arg2[%c0_2, %c0_3] : memref<32x64xbf16, #tpu.memory_space<vmem>>, vector<32x64xbf16>
    %cst = arith.constant dense<0.000000e+00> : vector<8x64xf32>
    %4 = tpu.matmul %2, %3, %cst {dimension_numbers = #tpu.dot_dimension_numbers<[1], [0], [0], [1], [0, 0, 1, 1], [], []>} : vector<8x32xbf16>, vector<32x64xbf16>, vector<8x64xf32> -> vector<8x64xf32>
    %c0_4 = arith.constant 0 : index
    %c0_5 = arith.constant 0 : index
    %5 = vector.load %arg3[%c0_4, %c0_5] : memref<1x64xf32, #tpu.memory_space<vmem>>, vector<1x64xf32>
    %6 = vector.broadcast %5 : vector<1x64xf32> to vector<8x64xf32>
    %7 = arith.addf %4, %6 : vector<8x64xf32>
    %8 = arith.truncf %7 : vector<8x64xf32> to vector<8x64xbf16>
    %9 = vector.extract_strided_slice %8 {offsets = [0, 0], sizes = [8, 32], strides = [1, 1]} : vector<8x64xbf16> to vector<8x32xbf16>
    %10 = vector.shape_cast %9 : vector<8x32xbf16> to vector<8x4x8xbf16>
    %11 = vector.extract_strided_slice %8 {offsets = [0, 32], sizes = [8, 32], strides = [1, 1]} : vector<8x64xbf16> to vector<8x32xbf16>
    %12 = vector.shape_cast %11 : vector<8x32xbf16> to vector<8x4x8xbf16>
    %13 = tpu.transpose %10, [1, 2, 0] : vector<8x4x8xbf16> -> vector<4x8x8xbf16>
    %c0_6 = arith.constant 0 : index
    %c0_7 = arith.constant 0 : index
    %c0_8 = arith.constant 0 : index
    %c0_9 = arith.constant 0 : index
    %14 = vector.load %arg4[%c0_6, %c0_7, %c0_8, %c0_9] : memref<1x4x8x8xbf16, #tpu.memory_space<vmem>>, vector<1x4x8x8xbf16>
    %15 = vector.shape_cast %14 : vector<1x4x8x8xbf16> to vector<4x8x8xbf16>
    %16 = vector.shape_cast %13 : vector<4x8x8xbf16> to vector<1x4x8x8xbf16>
    tpu.vector_store %arg4[%c0_6, %c0_7, %c0_8, %c0_9], %16 {strides = array<i32>} : memref<1x4x8x8xbf16, #tpu.memory_space<vmem>>, vector<1x4x8x8xbf16>,
    %17 = tpu.transpose %12, [1, 0, 2] : vector<8x4x8xbf16> -> vector<4x8x8xbf16>
    %c0_10 = arith.constant 0 : index
    %c0_11 = arith.constant 0 : index
    %c0_12 = arith.constant 0 : index
    %c0_13 = arith.constant 0 : index
    %18 = vector.load %arg5[%c0_10, %c0_11, %c0_12, %c0_13] : memref<1x4x8x8xbf16, #tpu.memory_space<vmem>>, vector<1x4x8x8xbf16>
    %19 = vector.shape_cast %18 : vector<1x4x8x8xbf16> to vector<4x8x8xbf16>
    %20 = vector.shape_cast %17 : vector<4x8x8xbf16> to vector<1x4x8x8xbf16>
    tpu.vector_store %arg5[%c0_10, %c0_11, %c0_12, %c0_13], %20 {strides = array<i32>} : memref<1x4x8x8xbf16, #tpu.memory_space<vmem>>, vector<1x4x8x8xbf16>,
    return
  }
  func.func @transform_0(%arg0: i32) -> (i32, i32, i32) {
    %c0_i32 = arith.constant 0 : i32
    %c0_i32_0 = arith.constant 0 : i32
    %c0_i32_1 = arith.constant 0 : i32
    return %arg0, %c0_i32, %c0_i32_0 : i32, i32, i32
  }
  func.func @transform_1(%arg0: i32) -> (i32, i32) {
    %c0_i32 = arith.constant 0 : i32
    %c0_i32_0 = arith.constant 0 : i32
    %c0_i32_1 = arith.constant 0 : i32
    return %c0_i32, %c0_i32_0 : i32, i32
  }
  func.func @transform_2(%arg0: i32) -> (i32, i32) {
    %c0_i32 = arith.constant 0 : i32
    %c0_i32_0 = arith.constant 0 : i32
    %c0_i32_1 = arith.constant 0 : i32
    return %c0_i32, %c0_i32_0 : i32, i32
  }
  func.func @transform_3(%arg0: i32) -> (i32, i32, i32, i32) {
    %c0_i32 = arith.constant 0 : i32
    %c0_i32_0 = arith.constant 0 : i32
    %c0_i32_1 = arith.constant 0 : i32
    %c0_i32_2 = arith.constant 0 : i32
    return %arg0, %c0_i32, %c0_i32_0, %c0_i32_1 : i32, i32, i32, i32
  }
  func.func @transform_4(%arg0: i32) -> (i32, i32, i32, i32) {
    %c0_i32 = arith.constant 0 : i32
    %c0_i32_0 = arith.constant 0 : i32
    %c0_i32_1 = arith.constant 0 : i32
    %c0_i32_2 = arith.constant 0 : i32
    return %arg0, %c0_i32, %c0_i32_0, %c0_i32_1 : i32, i32, i32, i32
  }
}

</mosaic_0001>

<llo_original>
// kernel: tpu_custom_call.1
$region0: #{tpu_custom_call.1}
  #allocation0 [shape = 'u32[]', space=smem, size = 0x4, offset = 0x4, fixed_abs, tag = 'smem constant byte address 0x4 - core index']
  #allocation1 [shape = 'u32[72,128]{1,0:T(1,128)}', space=vmem, size = 0x9000, scoped, tag = 'internal scratch']
  %s0 = inlined_call_operand.hbm [shape: f32[2,8,32], index: 0, kind: input, shape index: {}]
  %s1 = inlined_call_operand.hbm [shape: bf16[32,64], index: 1, kind: input, shape index: {}]
  %s2 = inlined_call_operand.vmem [shape: f32[1,64], index: 2, kind: input, shape index: {}]
  %s3 = inlined_call_operand.hbm [shape: bf16[2,4,8,8], index: 3, kind: output, shape index: {0}]
  %s4 = inlined_call_operand.hbm [shape: bf16[2,4,8,8], index: 4, kind: output, shape index: {1}]
  %5 = xla_tuple %s3, %s4
  %s6 = sld [smem:[#allocation0]]
  $region61: #{tpu_custom_call.1} parent=0
    _
  %s8 = ssub.s32 1, %s6
  %s9 = scalar_select 0, %s8, %s6
  $region1: #{tpu_custom_call.1} parent=0
    #allocation2 [shape = 'u8[8192]{0}', space=vmem, size = 0x2000, scoped, tag = 'input window, operand 0']
    #allocation3 [shape = 's32[2]{0}', space=sflag, size = 0x8, scoped, tag = 'scoped memory for tpu_custom_call.1']
    #allocation4 [shape = 's32[2]{0}', space=sflag, size = 0x8, scoped, tag = 'scoped memory for tpu_custom_call.1']
    #allocation5 [shape = 'u8[8192]{0}', space=vmem, size = 0x2000, scoped, tag = 'input window, operand 1, single buffered']
    #allocation6 [shape = 's32[1]{0}', space=sflag, size = 0x4, scoped, tag = 'scoped memory for tpu_custom_call.1']
    #allocation7 [shape = 'u8[16384]{0}', space=vmem, size = 0x4000, scoped, tag = 'output window, operand 0']
    #allocation8 [shape = 'u8[16384]{0}', space=vmem, size = 0x4000, scoped, tag = 'output window, operand 1']
    #allocation9 [shape = 's32[2]{0}', space=sflag, size = 0x8, scoped, tag = 'scoped memory for tpu_custom_call.1']
    %10 = vsyncpa [#allocation3], 0
    %s11 = scalar_lea.sflag [#allocation3], 1
    %12 = vsyncpa %s11, 0
    %13 = vsyncpa [#allocation6], 0
    %14 = vsyncpa [#allocation4], 0
    %s15 = scalar_lea.sflag [#allocation4], 1
    %16 = vsyncpa %s15, 0
    %17 = vsyncpa [#allocation9], 0
    %s18 = scalar_lea.sflag [#allocation9], 1
    %19 = vsyncpa %s18, 0
    loop: start=0, step=1, limit=4
    $region2: #{tpu_custom_call.1} parent=1 // loop_pre_header
      _
    $region3: #{tpu_custom_call.1} parent=1 // loop_header
      %s21 = sphi 0, %s25
      %p22 = scmp.ge.s32.totalorder %s21, 4
      %s31 = sphi 0, %s33
      %s34 = sphi 0, %s31
      %s35 = sphi 0, %s34
      %s51 = sphi 0, %s35
      %s55 = sphi 0, %s55
      %s57 = sphi 0, %s55
      %s58 = sphi 0, %s57
      %s72 = sphi 0, %s58
      %s76 = sphi 0, %s76
      %s78 = sphi 0, %s76
      %s79 = sphi 0, %s78
      %s93 = sphi 0, %s79
      %s99 = sphi 0, %s101
      %s102 = sphi 0, %s99
      %s103 = sphi 0, %s102
      %s119 = sphi 0, %s103
      %s125 = sphi 0, %s127
      %s128 = sphi 0, %s125
      %s129 = sphi 0, %s128
      %s145 = sphi 0, %s129
    $region4: #{tpu_custom_call.1} parent=1 // loop_header_branch
      %24 = sbr.rel (%p22) target = $region8
    $region5: #{tpu_custom_call.1} parent=1 // loop_body
      %s26 = ssub.s32 %s21, 1
      %s27 = ssub.s32 %s21, 2
      %s28 = sadd.s32 %s21, 1
      %s29 = ssub.s32 %s21, %s28
      %p30 = scmp.eq.s32.totalorder %s29, 0
      %s32 = sadd.s32 %s31, 1
      %s33 = scalar_select %p30, %s31, %s32
      %p36 = pneg %p30
      %p37 = scmp.eq.s32.totalorder %s21, 1
      %p38 = por %p36, %p37
      %p39 = scmp.ne.s32.totalorder %s31, %s34
      %p40 = scmp.eq.s32.totalorder %s21, 0
      %p41 = por %p39, %p40
      %p42 = scmp.ne.s32.totalorder %s31, %s34
      %p43 = scmp.eq.s32.totalorder %s26, 1
      %p44 = por %p42, %p43
      %p45 = scmp.ne.s32.totalorder %s34, %s35
      %p46 = scmp.eq.s32.totalorder %s26, 0
      %p47 = por %p45, %p46
      %p48 = scmp.ne.s32.totalorder %s34, %s35
      %p49 = scmp.eq.s32.totalorder %s27, 1
      %p50 = por %p48, %p49
      %p52 = scmp.ne.s32.totalorder %s35, %s51
      %p53 = scmp.eq.s32.totalorder %s27, 0
      %p54 = por %p52, %p53
      %s56 = sadd.s32 %s55, 1
      %p59 = scmp.eq.s32.totalorder %s21, 1
      %p60 = scmp.ne.s32.totalorder %s55, %s57
      %p61 = scmp.eq.s32.totalorder %s21, 0
      %p62 = por %p60, %p61
      %p63 = scmp.ne.s32.totalorder %s55, %s57
      %p64 = scmp.eq.s32.totalorder %s26, 1
      %p65 = por %p63, %p64
      %p66 = scmp.ne.s32.totalorder %s57, %s58
      %p67 = scmp.eq.s32.totalorder %s26, 0
      %p68 = por %p66, %p67
      %p69 = scmp.ne.s32.totalorder %s57, %s58
      %p70 = scmp.eq.s32.totalorder %s27, 1
      %p71 = por %p69, %p70
      %p73 = scmp.ne.s32.totalorder %s58, %s72
      %p74 = scmp.eq.s32.totalorder %s27, 0
      %p75 = por %p73, %p74
      %s77 = sadd.s32 %s76, 1
      %p80 = scmp.eq.s32.totalorder %s21, 1
      %p81 = scmp.ne.s32.totalorder %s76, %s78
      %p82 = scmp.eq.s32.totalorder %s21, 0
      %p83 = por %p81, %p82
      %p84 = scmp.ne.s32.totalorder %s76, %s78
      %p85 = scmp.eq.s32.totalorder %s26, 1
      %p86 = por %p84, %p85
      %p87 = scmp.ne.s32.totalorder %s78, %s79
      %p88 = scmp.eq.s32.totalorder %s26, 0
      %p89 = por %p87, %p88
      %p90 = scmp.ne.s32.totalorder %s78, %s79
      %p91 = scmp.eq.s32.totalorder %s27, 1
      %p92 = por %p90, %p91
      %p94 = scmp.ne.s32.totalorder %s79, %s93
      %p95 = scmp.eq.s32.totalorder %s27, 0
      %p96 = por %p94, %p95
      %s97 = ssub.s32 %s21, %s28
      %p98 = scmp.eq.s32.totalorder %s97, 0
      %s100 = sadd.s32 %s99, 1
      %s101 = scalar_select %p98, %s99, %s100
      %p104 = pneg %p98
      %p105 = scmp.eq.s32.totalorder %s21, 1
      %p106 = por %p104, %p105
      %p107 = scmp.ne.s32.totalorder %s99, %s102
      %p108 = scmp.eq.s32.totalorder %s21, 0
      %p109 = por %p107, %p108
      %p110 = scmp.ne.s32.totalorder %s99, %s102
      %p111 = scmp.eq.s32.totalorder %s26, 1
      %p112 = por %p110, %p111
      %p113 = scmp.ne.s32.totalorder %s102, %s103
      %p114 = scmp.eq.s32.totalorder %s26, 0
      %p115 = por %p113, %p114
      %p116 = scmp.ne.s32.totalorder %s102, %s103
      %p117 = scmp.eq.s32.totalorder %s27, 1
      %p118 = por %p116, %p117
      %p120 = scmp.ne.s32.totalorder %s103, %s119
      %p121 = scmp.eq.s32.totalorder %s27, 0
      %p122 = por %p120, %p121
      %s123 = ssub.s32 %s21, %s28
      %p124 = scmp.eq.s32.totalorder %s123, 0
      %s126 = sadd.s32 %s125, 1
      %s127 = scalar_select %p124, %s125, %s126
      %p130 = pneg %p124
      %p131 = scmp.eq.s32.totalorder %s21, 1
      %p132 = por %p130, %p131
      %p133 = scmp.ne.s32.totalorder %s125, %s128
      %p134 = scmp.eq.s32.totalorder %s21, 0
      %p135 = por %p133, %p134
      %p136 = scmp.ne.s32.totalorder %s125, %s128
      %p137 = scmp.eq.s32.totalorder %s26, 1
      %p138 = por %p136, %p137
      %p139 = scmp.ne.s32.totalorder %s128, %s129
      %p140 = scmp.eq.s32.totalorder %s26, 0
      %p141 = por %p139, %p140
      %p142 = scmp.ne.s32.totalorder %s128, %s129
      %p143 = scmp.eq.s32.totalorder %s27, 1
      %p144 = por %p142, %p143
      %p146 = scmp.ne.s32.totalorder %s129, %s145
      %p147 = scmp.eq.s32.totalorder %s27, 0
      %p148 = por %p146, %p147
      %p149 = scmp.le.s32.totalorder 1, %s21
      %p150 = scmp.lt.s32.totalorder %s21, 3
      %p151 = pnand %p149, %p150
      %p152 = pneg %p151
      // Predicated region
      $region9: #{tpu_custom_call.1} parent=5 // pred_check
        _
      $region10: #{tpu_custom_call.1} parent=5 // pred_check_branch
        %154 = sbr.rel (%p151) target = $region12
      $region11: #{tpu_custom_call.1} parent=5 // pred_region
        %s155 = ssub.s32 %s21, 1
        // Predicated region
        $region13: #{tpu_custom_call.1} parent=11 // pred_check
          %p156 = pneg %p68
        $region14: #{tpu_custom_call.1} parent=11 // pred_check_branch
          %158 = sbr.rel (%p156) target = $region16
        $region15: #{tpu_custom_call.1} parent=11 // pred_region
          %160 = vsyncadd [#allocation6], 0
          %s161 = sshll.u32 %s1, 4
          %s162 = int_to_ptr.hbm [resolvable:$true] %s161
          %s163 = sshll.u32 [#allocation5], 4
          %s164 = int_to_ptr.vmem [resolvable:$true] %s163
          %169 = dma.hbm_to_vmem [thread:$0]  %s162, 256, %s164, [#allocation6], 64, 64, 4
        $region16: #{tpu_custom_call.1} parent=11 // pred_fallthru
          _
        // Predicated region
        $region17: #{tpu_custom_call.1} parent=11 // pred_check
          %p170 = pneg %p89
        $region18: #{tpu_custom_call.1} parent=11 // pred_check_branch
          %172 = sbr.rel (%p170) target = $region20
        $region19: #{tpu_custom_call.1} parent=11 // pred_region
          _
        $region20: #{tpu_custom_call.1} parent=11 // pred_fallthru
          _
      $region12: #{tpu_custom_call.1} parent=5 // pred_fallthru
        _
      %p173 = scmp.lt.s32.totalorder %s21, 2
      // Predicated region
      $region21: #{tpu_custom_call.1} parent=5 // pred_check
        %p174 = pneg %p173
      $region22: #{tpu_custom_call.1} parent=5 // pred_check_branch
        %176 = sbr.rel (%p174) target = $region24
      $region23: #{tpu_custom_call.1} parent=5 // pred_region
        // Predicated region
        $region25: #{tpu_custom_call.1} parent=23 // pred_check
          %p177 = pneg %p41
        $region26: #{tpu_custom_call.1} parent=23 // pred_check_branch
          %179 = sbr.rel (%p177) target = $region28
        $region27: #{tpu_custom_call.1} parent=23 // pred_region
          %s180 = sand.u32 %s31, 1
          %s181 = scalar_lea.sflag [#allocation3], %s180
          %s182 = sand.u32 %s31, 1
          %s183 = smul.addr %s182, 8
          %s184 = scalar_lea.vmem [#allocation2], %s183
          %186 = vsyncadd %s181, 0
          %s187 = smul.addr %s21, 8
          %s188 = scalar_lea.hbm %s0, %s187
          %s190 = sshll.u32 %s188, 4
          %s191 = int_to_ptr.hbm [resolvable:$true] %s190
          %s192 = sshll.u32 %s184, 4
          %s193 = int_to_ptr.vmem [resolvable:$true] %s192
          %195 = dma.hbm_to_vmem [thread:$0]  %s191, 128, %s193, %s181
        $region28: #{tpu_custom_call.1} parent=23 // pred_fallthru
          _
      $region24: #{tpu_custom_call.1} parent=5 // pred_fallthru
        _
      %p196 = scmp.le.s32.totalorder 1, %s21
      %p197 = scmp.lt.s32.totalorder %s21, 3
      %p198 = pnand %p196, %p197
      %p199 = pneg %p198
      // Predicated region
      $region29: #{tpu_custom_call.1} parent=5 // pred_check
        _
      $region30: #{tpu_custom_call.1} parent=5 // pred_check_branch
        %201 = sbr.rel (%p198) target = $region32
      $region31: #{tpu_custom_call.1} parent=5 // pred_region
        %s202 = ssub.s32 %s21, 1
        %s203 = sand.u32 %s34, 1
        %s204 = scalar_lea.sflag [#allocation3], %s203
        %s205 = sand.u32 %s34, 1
        %s206 = smul.addr %s205, 8
        %s207 = scalar_lea.vmem [#allocation2], %s206
        // Predicated region
        $region33: #{tpu_custom_call.1} parent=31 // pred_check
          %p208 = pneg %p47
        $region34: #{tpu_custom_call.1} parent=31 // pred_check_branch
          %210 = sbr.rel (%p208) target = $region36
        $region35: #{tpu_custom_call.1} parent=31 // pred_region
          %212 = dma.done %s204, 128
        $region36: #{tpu_custom_call.1} parent=31 // pred_fallthru
          _
        // Predicated region
        $region37: #{tpu_custom_call.1} parent=31 // pred_check
          %p213 = pneg %p68
        $region38: #{tpu_custom_call.1} parent=31 // pred_check_branch
          %215 = sbr.rel (%p213) target = $region40
        $region39: #{tpu_custom_call.1} parent=31 // pred_region
          %217 = dma.done [#allocation6], 256
        $region40: #{tpu_custom_call.1} parent=31 // pred_fallthru
          _
        %s218 = sand.u32 %s34, 1
        %s219 = scalar_lea.sflag [#allocation3], %s218
        %s220 = sand.u32 %s34, 1
        %s221 = smul.addr %s220, 8
        %s222 = scalar_lea.vmem [#allocation2], %s221
        %p223 = pneg %p47
        %p224 = pneg %p44
        %p225 = pneg %p68
        %p226 = pneg %p65
        %p227 = pneg %p89
        %p228 = pneg %p86
        %p229 = pneg %p115
        %p230 = pneg %p112
        %s231 = sand.u32 %s102, 1
        %s232 = scalar_lea.sflag [#allocation4], %s231
        %s233 = sand.u32 %s102, 1
        %s234 = smul.addr %s233, 16
        %s235 = scalar_lea.vmem [#allocation7], %s234
        %p236 = pneg %p141
        %p237 = pneg %p138
        %s238 = sand.u32 %s128, 1
        %s239 = scalar_lea.sflag [#allocation9], %s238
        %s240 = sand.u32 %s128, 1
        %s241 = smul.addr %s240, 16
        %s242 = scalar_lea.vmem [#allocation8], %s241
        %v244 = vld [vmem:[%s207] sm:$0xff]
        %v245 = vpack.c.bf16 %v244, %v244
        %v246 = vld [vmem:[#allocation5] sm:$0xf]
        %v247 = vld [vmem:[#allocation5 + $0x4] sm:$0xf]
        %v248 = vld [vmem:[#allocation5 + $0x8] sm:$0xf]
        %v249 = vld [vmem:[#allocation5 + $0xc] sm:$0xf]
        %v250 = vld [vmem:[%s2] sm:$0x1]
        %v252 = vperm.slane %v250, 0
        %v258 = vunpack.c.l.b16 %v246
        %v259 = vunpack.c.l.b16 %v247
        %v260 = vunpack.c.l.b16 %v248
        %v261 = vunpack.c.l.b16 %v249
        %v262 = vpack.c.b16 %v259, %v258
        %v263 = vpack.c.b16 %v261, %v260
        %vm266 = vcmask 261120
        %v268 = vsel %vm266, %v245, 0
        %270 = vmatpush.bf16.msra.mxu0 0
        %271 = vmatpush.bf16.msra.mxu0 0
        %272 = vmatpush.bf16.msra.mxu0 0
        %273 = vmatpush.bf16.msra.mxu0 0
        %274 = vmatpush.bf16.msra.mxu0 0
        %275 = vmatpush.bf16.msra.mxu0 0
        %276 = vmatpush.bf16.msra.mxu0 %v263
        %277 = vmatpush.bf16.msra.mxu0 %v262
        %278 = vmatmul.bf16.gmra.mxu0 %v268
        %v279 = vpop.f32.mrf.mxu0
        %v280 = vadd.f32 %v252, %v279
        %v281 = vpop.f32.mrf.mxu0
        %282 = vdwg.mxu0
        %v283 = vpack.c.bf16 %v280, %v280
        %285 = vrot.lane.b32.xlu0 %v283, 120
        %v286 = vpop.permute.xlu0 %285
        %287 = vrot.lane.b32.xlu0 %v283, 112
        %v288 = vpop.permute.xlu0 %287
        %289 = vrot.lane.b32.xlu0 %v283, 104
        %v290 = vpop.permute.xlu0 %289
        %v293 = vpack.i.b16 %v286, %v283
        %v294 = vshrl.u32 %v283, 16
        %v295 = vshrl.u32 %v286, 16
        %v296 = vpack.i.b16 %v295, %v294
        %v299 = vpack.i.b16 %v290, %v288
        %v300 = vshrl.u32 %v288, 16
        %v301 = vshrl.u32 %v290, 16
        %v302 = vpack.i.b16 %v301, %v300
        %v305 = vunpack.c.l.s4 1983009808
        %v306 = vunpack.c.0.s8 %v305
        %v307 = vperm.slane %v293, %v306
        %v310 = vunpack.c.l.s4 1983009808
        %v311 = vunpack.c.0.s8 %v310
        %v312 = vperm.slane %v299, %v311
        %v313 = vrot.slane %v312, 4
        %vm314 = vcmask 1047556
        %v315 = vsel %vm314, %v313, %v307
        %v316 = vrot.slane %v307, 4
        %v317 = vsel %vm314, %v312, %v316
        %v319 = vunpack.c.l.s4 1934713408
        %v320 = vunpack.c.0.s8 %v319
        %v321 = vperm.slane %v315, %v320
        %v323 = vunpack.c.l.s4 1934713408
        %v324 = vunpack.c.0.s8 %v323
        %v325 = vperm.slane %v317, %v324
        %v326 = vrot.slane %v321, 4
        %v327 = vsel %vm314, 0, %v326
        %v328 = vrot.slane %v325, 4
        %v329 = vsel %vm314, 0, %v328
        %v332 = vunpack.c.l.s4 1983009808
        %v333 = vunpack.c.0.s8 %v332
        %v334 = vperm.slane %v296, %v333
        %v337 = vunpack.c.l.s4 1983009808
        %v338 = vunpack.c.0.s8 %v337
        %v339 = vperm.slane %v302, %v338
        %v340 = vrot.slane %v339, 4
        %v341 = vsel %vm314, %v340, %v334
        %v342 = vrot.slane %v334, 4
        %v343 = vsel %vm314, %v339, %v342
        %v345 = vunpack.c.l.s4 1934713408
        %v346 = vunpack.c.0.s8 %v345
        %v347 = vperm.slane %v341, %v346
        %v349 = vunpack.c.l.s4 1934713408
        %v350 = vunpack.c.0.s8 %v349
        %v351 = vperm.slane %v343, %v350
        %v352 = vrot.slane %v347, 4
        %v353 = vsel %vm314, 0, %v352
        %v354 = vrot.slane %v351, 4
        %v355 = vsel %vm314, 0, %v354
        %356 = vrot.lane.b32.xlu0 %v283, 96
        %v357 = vpop.permute.xlu0 %356
        %358 = vrot.lane.b32.xlu0 %v286, 96
        %v359 = vpop.permute.xlu0 %358
        %360 = vrot.lane.b32.xlu0 %v288, 96
        %v361 = vpop.permute.xlu0 %360
        %362 = vrot.lane.b32.xlu0 %v290, 96
        %v363 = vpop.permute.xlu0 %362
        %v366 = vpack.i.b16 %v359, %v357
        %v367 = vshrl.u32 %v357, 16
        %v368 = vshrl.u32 %v359, 16
        %v369 = vpack.i.b16 %v368, %v367
        %v372 = vpack.i.b16 %v363, %v361
        %v373 = vshrl.u32 %v361, 16
        %v374 = vshrl.u32 %v363, 16
        %v375 = vpack.i.b16 %v374, %v373
        %v378 = vunpack.c.l.s4 1983009808
        %v379 = vunpack.c.0.s8 %v378
        %v380 = vperm.slane %v366, %v379
        %v383 = vunpack.c.l.s4 1983009808
        %v384 = vunpack.c.0.s8 %v383
        %v385 = vperm.slane %v372, %v384
        %v386 = vrot.slane %v385, 4
        %v387 = vsel %vm314, %v386, %v380
        %v388 = vrot.slane %v380, 4
        %v389 = vsel %vm314, %v385, %v388
        %v391 = vunpack.c.l.s4 1934713408
        %v392 = vunpack.c.0.s8 %v391
        %v393 = vperm.slane %v387, %v392
        %v395 = vunpack.c.l.s4 1934713408
        %v396 = vunpack.c.0.s8 %v395
        %v397 = vperm.slane %v389, %v396
        %v398 = vrot.slane %v393, 4
        %v399 = vsel %vm314, 0, %v398
        %v400 = vrot.slane %v397, 4
        %v401 = vsel %vm314, 0, %v400
        %v404 = vunpack.c.l.s4 1983009808
        %v405 = vunpack.c.0.s8 %v404
        %v406 = vperm.slane %v369, %v405
        %v409 = vunpack.c.l.s4 1983009808
        %v410 = vunpack.c.0.s8 %v409
        %v411 = vperm.slane %v375, %v410
        %v412 = vrot.slane %v411, 4
        %v413 = vsel %vm314, %v412, %v406
        %v414 = vrot.slane %v406, 4
        %v415 = vsel %vm314, %v411, %v414
        %v417 = vunpack.c.l.s4 1934713408
        %v418 = vunpack.c.0.s8 %v417
        %v419 = vperm.slane %v413, %v418
        %v421 = vunpack.c.l.s4 1934713408
        %v422 = vunpack.c.0.s8 %v421
        %v423 = vperm.slane %v415, %v422
        %v424 = vrot.slane %v419, 4
        %v425 = vsel %vm314, 0, %v424
        %v426 = vrot.slane %v423, 4
        %v427 = vsel %vm314, 0, %v426
        %428 = vxpose.xlu0.c.b16.start [1/8] %v321, 128
        %429 = vxpose.xlu0.c.b16.cont [2/8] 0, 128
        %430 = vxpose.xlu0.c.b16.cont [3/8] 0, 128
        %431 = vxpose.xlu0.c.b16.cont [4/8] 0, 128
        %432 = vxpose.xlu0.c.b16.cont [5/8] 0, 128
        %433 = vxpose.xlu0.c.b16.cont [6/8] 0, 128
        %434 = vxpose.xlu0.c.b16.cont [7/8] 0, 128
        %435 = vxpose.xlu0.c.b16.end [8/8] 0, 128
        %v436 = vpop.trf.xlu0
        %v437 = vpop.trf.xlu0
        %v438 = vpop.trf.xlu0
        %v439 = vpop.trf.xlu0
        %v440 = vpop.trf.xlu0
        %v441 = vpop.trf.xlu0
        %v442 = vpop.trf.xlu0
        %v443 = vpop.trf.xlu0
        %444 = vxpose.xlu0.c.b16.start [1/8] %v347, 128
        %445 = vxpose.xlu0.c.b16.cont [2/8] 0, 128
        %446 = vxpose.xlu0.c.b16.cont [3/8] 0, 128
        %447 = vxpose.xlu0.c.b16.cont [4/8] 0, 128
        %448 = vxpose.xlu0.c.b16.cont [5/8] 0, 128
        %449 = vxpose.xlu0.c.b16.cont [6/8] 0, 128
        %450 = vxpose.xlu0.c.b16.cont [7/8] 0, 128
        %451 = vxpose.xlu0.c.b16.end [8/8] 0, 128
        %v452 = vpop.trf.xlu0
        %v453 = vpop.trf.xlu0
        %v454 = vpop.trf.xlu0
        %v455 = vpop.trf.xlu0
        %v456 = vpop.trf.xlu0
        %v457 = vpop.trf.xlu0
        %v458 = vpop.trf.xlu0
        %v459 = vpop.trf.xlu0
        %460 = vxpose.xlu0.c.b16.start [1/8] %v327, 128
        %461 = vxpose.xlu0.c.b16.cont [2/8] 0, 128
        %462 = vxpose.xlu0.c.b16.cont [3/8] 0, 128
        %463 = vxpose.xlu0.c.b16.cont [4/8] 0, 128
        %464 = vxpose.xlu0.c.b16.cont [5/8] 0, 128
        %465 = vxpose.xlu0.c.b16.cont [6/8] 0, 128
        %466 = vxpose.xlu0.c.b16.cont [7/8] 0, 128
        %467 = vxpose.xlu0.c.b16.end [8/8] 0, 128
        %v468 = vpop.trf.xlu0
        %v469 = vpop.trf.xlu0
        %v470 = vpop.trf.xlu0
        %v471 = vpop.trf.xlu0
        %v472 = vpop.trf.xlu0
        %v473 = vpop.trf.xlu0
        %v474 = vpop.trf.xlu0
        %v475 = vpop.trf.xlu0
        %476 = vxpose.xlu0.c.b16.start [1/8] %v353, 128
        %477 = vxpose.xlu0.c.b16.cont [2/8] 0, 128
        %478 = vxpose.xlu0.c.b16.cont [3/8] 0, 128
        %479 = vxpose.xlu0.c.b16.cont [4/8] 0, 128
        %480 = vxpose.xlu0.c.b16.cont [5/8] 0, 128
        %481 = vxpose.xlu0.c.b16.cont [6/8] 0, 128
        %482 = vxpose.xlu0.c.b16.cont [7/8] 0, 128
        %483 = vxpose.xlu0.c.b16.end [8/8] 0, 128
        %v484 = vpop.trf.xlu0
        %v485 = vpop.trf.xlu0
        %v486 = vpop.trf.xlu0
        %v487 = vpop.trf.xlu0
        %v488 = vpop.trf.xlu0
        %v489 = vpop.trf.xlu0
        %v490 = vpop.trf.xlu0
        %v491 = vpop.trf.xlu0
        %492 = vxpose.xlu0.c.b16.start [1/8] %v325, 128
        %493 = vxpose.xlu0.c.b16.cont [2/8] 0, 128
        %494 = vxpose.xlu0.c.b16.cont [3/8] 0, 128
        %495 = vxpose.xlu0.c.b16.cont [4/8] 0, 128
        %496 = vxpose.xlu0.c.b16.cont [5/8] 0, 128
        %497 = vxpose.xlu0.c.b16.cont [6/8] 0, 128
        %498 = vxpose.xlu0.c.b16.cont [7/8] 0, 128
        %499 = vxpose.xlu0.c.b16.end [8/8] 0, 128
        %v500 = vpop.trf.xlu0
        %v501 = vpop.trf.xlu0
        %v502 = vpop.trf.xlu0
        %v503 = vpop.trf.xlu0
        %v504 = vpop.trf.xlu0
        %v505 = vpop.trf.xlu0
        %v506 = vpop.trf.xlu0
        %v507 = vpop.trf.xlu0
        %508 = vxpose.xlu0.c.b16.start [1/8] %v351, 128
        %509 = vxpose.xlu0.c.b16.cont [2/8] 0, 128
        %510 = vxpose.xlu0.c.b16.cont [3/8] 0, 128
        %511 = vxpose.xlu0.c.b16.cont [4/8] 0, 128
        %512 = vxpose.xlu0.c.b16.cont [5/8] 0, 128
        %513 = vxpose.xlu0.c.b16.cont [6/8] 0, 128
        %514 = vxpose.xlu0.c.b16.cont [7/8] 0, 128
        %515 = vxpose.xlu0.c.b16.end [8/8] 0, 128
        %v516 = vpop.trf.xlu0
        %v517 = vpop.trf.xlu0
        %v518 = vpop.trf.xlu0
        %v519 = vpop.trf.xlu0
        %v520 = vpop.trf.xlu0
        %v521 = vpop.trf.xlu0
        %v522 = vpop.trf.xlu0
        %v523 = vpop.trf.xlu0
        %524 = vxpose.xlu0.c.b16.start [1/8] %v329, 128
        %525 = vxpose.xlu0.c.b16.cont [2/8] 0, 128
        %526 = vxpose.xlu0.c.b16.cont [3/8] 0, 128
        %527 = vxpose.xlu0.c.b16.cont [4/8] 0, 128
        %528 = vxpose.xlu0.c.b16.cont [5/8] 0, 128
        %529 = vxpose.xlu0.c.b16.cont [6/8] 0, 128
        %530 = vxpose.xlu0.c.b16.cont [7/8] 0, 128
        %531 = vxpose.xlu0.c.b16.end [8/8] 0, 128
        %v532 = vpop.trf.xlu0
        %v533 = vpop.trf.xlu0
        %v534 = vpop.trf.xlu0
        %v535 = vpop.trf.xlu0
        %v536 = vpop.trf.xlu0
        %v537 = vpop.trf.xlu0
        %v538 = vpop.trf.xlu0
        %v539 = vpop.trf.xlu0
        %540 = vxpose.xlu0.c.b16.start [1/8] %v355, 128
        %541 = vxpose.xlu0.c.b16.cont [2/8] 0, 128
        %542 = vxpose.xlu0.c.b16.cont [3/8] 0, 128
        %543 = vxpose.xlu0.c.b16.cont [4/8] 0, 128
        %544 = vxpose.xlu0.c.b16.cont [5/8] 0, 128
        %545 = vxpose.xlu0.c.b16.cont [6/8] 0, 128
        %546 = vxpose.xlu0.c.b16.cont [7/8] 0, 128
        %547 = vxpose.xlu0.c.b16.end [8/8] 0, 128
        %v548 = vpop.trf.xlu0
        %v549 = vpop.trf.xlu0
        %v550 = vpop.trf.xlu0
        %v551 = vpop.trf.xlu0
        %v552 = vpop.trf.xlu0
        %v553 = vpop.trf.xlu0
        %v554 = vpop.trf.xlu0
        %v555 = vpop.trf.xlu0
        %v556 = vrot.slane %v500, 4
        %v557 = vsel %vm314, %v556, %v436
        %v559 = vunpack.c.l.s4 1983009808
        %v560 = vunpack.c.0.s8 %v559
        %v561 = vperm.slane %v557, %v560
        %v562 = vrot.slane %v532, 4
        %v563 = vsel %vm314, %v562, %v468
        %v565 = vunpack.c.l.s4 1983009808
        %v566 = vunpack.c.0.s8 %v565
        %v567 = vperm.slane %v563, %v566
        %v568 = vrot.slane %v567, 4
        %v569 = vsel %vm314, %v568, %v561
        %v570 = vrot.slane %v561, 4
        %v571 = vsel %vm314, %v567, %v570
        %v573 = vunpack.c.l.s4 1934713408
        %v574 = vunpack.c.0.s8 %v573
        %v575 = vperm.slane %v569, %v574
        %v577 = vunpack.c.l.s4 1934713408
        %v578 = vunpack.c.0.s8 %v577
        %v579 = vperm.slane %v571, %v578
        %v580 = vrot.slane %v575, 4
        %v581 = vsel %vm314, 0, %v580
        %v582 = vrot.slane %v579, 4
        %v583 = vsel %vm314, 0, %v582
        %v584 = vrot.slane %v516, 4
        %v585 = vsel %vm314, %v584, %v452
        %v587 = vunpack.c.l.s4 1983009808
        %v588 = vunpack.c.0.s8 %v587
        %v589 = vperm.slane %v585, %v588
        %v590 = vrot.slane %v548, 4
        %v591 = vsel %vm314, %v590, %v484
        %v593 = vunpack.c.l.s4 1983009808
        %v594 = vunpack.c.0.s8 %v593
        %v595 = vperm.slane %v591, %v594
        %v596 = vrot.slane %v595, 4
        %v597 = vsel %vm314, %v596, %v589
        %v598 = vrot.slane %v589, 4
        %v599 = vsel %vm314, %v595, %v598
        %v601 = vunpack.c.l.s4 1934713408
        %v602 = vunpack.c.0.s8 %v601
        %v603 = vperm.slane %v597, %v602
        %v605 = vunpack.c.l.s4 1934713408
        %v606 = vunpack.c.0.s8 %v605
        %v607 = vperm.slane %v599, %v606
        %v608 = vrot.slane %v603, 4
        %v609 = vsel %vm314, 0, %v608
        %v610 = vrot.slane %v607, 4
        %v611 = vsel %vm314, 0, %v610
        %v614 = vpack.i.b16 %v603, %v575
        %v616 = vshrl.u32 %v575, 16
        %v617 = vshrl.u32 %v603, 16
        %v618 = vpack.i.b16 %v617, %v616
        %v622 = vpack.i.b16 %v609, %v581
        %v624 = vshrl.u32 %v581, 16
        %v625 = vshrl.u32 %v609, 16
        %v626 = vpack.i.b16 %v625, %v624
        %v630 = vpack.i.b16 %v607, %v579
        %v632 = vshrl.u32 %v579, 16
        %v633 = vshrl.u32 %v607, 16
        %v634 = vpack.i.b16 %v633, %v632
        %v638 = vpack.i.b16 %v611, %v583
        %v640 = vshrl.u32 %v583, 16
        %v641 = vshrl.u32 %v611, 16
        %v642 = vpack.i.b16 %v641, %v640
        %644 = vxpose.xlu0.c.b16.start [1/8] %v614, 128
        %645 = vxpose.xlu0.c.b16.cont [2/8] 0, 128
        %646 = vxpose.xlu0.c.b16.cont [3/8] 0, 128
        %647 = vxpose.xlu0.c.b16.cont [4/8] 0, 128
        %648 = vxpose.xlu0.c.b16.cont [5/8] 0, 128
        %649 = vxpose.xlu0.c.b16.cont [6/8] 0, 128
        %650 = vxpose.xlu0.c.b16.cont [7/8] 0, 128
        %651 = vxpose.xlu0.c.b16.end [8/8] 0, 128
        %v652 = vpop.trf.xlu0
        %v653 = vpop.trf.xlu0
        %v654 = vpop.trf.xlu0
        %v655 = vpop.trf.xlu0
        %v656 = vpop.trf.xlu0
        %v657 = vpop.trf.xlu0
        %v658 = vpop.trf.xlu0
        %v659 = vpop.trf.xlu0
        %660 = vxpose.xlu0.c.b16.start [1/8] %v618, 128
        %661 = vxpose.xlu0.c.b16.cont [2/8] 0, 128
        %662 = vxpose.xlu0.c.b16.cont [3/8] 0, 128
        %663 = vxpose.xlu0.c.b16.cont [4/8] 0, 128
        %664 = vxpose.xlu0.c.b16.cont [5/8] 0, 128
        %665 = vxpose.xlu0.c.b16.cont [6/8] 0, 128
        %666 = vxpose.xlu0.c.b16.cont [7/8] 0, 128
        %667 = vxpose.xlu0.c.b16.end [8/8] 0, 128
        %v668 = vpop.trf.xlu0
        %v669 = vpop.trf.xlu0
        %v670 = vpop.trf.xlu0
        %v671 = vpop.trf.xlu0
        %v672 = vpop.trf.xlu0
        %v673 = vpop.trf.xlu0
        %v674 = vpop.trf.xlu0
        %v675 = vpop.trf.xlu0
        %676 = vxpose.xlu0.c.b16.start [1/8] %v622, 128
        %677 = vxpose.xlu0.c.b16.cont [2/8] 0, 128
        %678 = vxpose.xlu0.c.b16.cont [3/8] 0, 128
        %679 = vxpose.xlu0.c.b16.cont [4/8] 0, 128
        %680 = vxpose.xlu0.c.b16.cont [5/8] 0, 128
        %681 = vxpose.xlu0.c.b16.cont [6/8] 0, 128
        %682 = vxpose.xlu0.c.b16.cont [7/8] 0, 128
        %683 = vxpose.xlu0.c.b16.end [8/8] 0, 128
        %v684 = vpop.trf.xlu0
        %v685 = vpop.trf.xlu0
        %v686 = vpop.trf.xlu0
        %v687 = vpop.trf.xlu0
        %v688 = vpop.trf.xlu0
        %v689 = vpop.trf.xlu0
        %v690 = vpop.trf.xlu0
        %v691 = vpop.trf.xlu0
        %692 = vxpose.xlu0.c.b16.start [1/8] %v626, 128
        %693 = vxpose.xlu0.c.b16.cont [2/8] 0, 128
        %694 = vxpose.xlu0.c.b16.cont [3/8] 0, 128
        %695 = vxpose.xlu0.c.b16.cont [4/8] 0, 128
        %696 = vxpose.xlu0.c.b16.cont [5/8] 0, 128
        %697 = vxpose.xlu0.c.b16.cont [6/8] 0, 128
        %698 = vxpose.xlu0.c.b16.cont [7/8] 0, 128
        %699 = vxpose.xlu0.c.b16.end [8/8] 0, 128
        %v700 = vpop.trf.xlu0
        %v701 = vpop.trf.xlu0
        %v702 = vpop.trf.xlu0
        %v703 = vpop.trf.xlu0
        %v704 = vpop.trf.xlu0
        %v705 = vpop.trf.xlu0
        %v706 = vpop.trf.xlu0
        %v707 = vpop.trf.xlu0
        %708 = vxpose.xlu0.c.b16.start [1/8] %v630, 128
        %709 = vxpose.xlu0.c.b16.cont [2/8] 0, 128
        %710 = vxpose.xlu0.c.b16.cont [3/8] 0, 128
        %711 = vxpose.xlu0.c.b16.cont [4/8] 0, 128
        %712 = vxpose.xlu0.c.b16.cont [5/8] 0, 128
        %713 = vxpose.xlu0.c.b16.cont [6/8] 0, 128
        %714 = vxpose.xlu0.c.b16.cont [7/8] 0, 128
        %715 = vxpose.xlu0.c.b16.end [8/8] 0, 128
        %v716 = vpop.trf.xlu0
        %v717 = vpop.trf.xlu0
        %v718 = vpop.trf.xlu0
        %v719 = vpop.trf.xlu0
        %v720 = vpop.trf.xlu0
        %v721 = vpop.trf.xlu0
        %v722 = vpop.trf.xlu0
        %v723 = vpop.trf.xlu0
        %724 = vxpose.xlu0.c.b16.start [1/8] %v634, 128
        %725 = vxpose.xlu0.c.b16.cont [2/8] 0, 128
        %726 = vxpose.xlu0.c.b16.cont [3/8] 0, 128
        %727 = vxpose.xlu0.c.b16.cont [4/8] 0, 128
        %728 = vxpose.xlu0.c.b16.cont [5/8] 0, 128
        %729 = vxpose.xlu0.c.b16.cont [6/8] 0, 128
        %730 = vxpose.xlu0.c.b16.cont [7/8] 0, 128
        %731 = vxpose.xlu0.c.b16.end [8/8] 0, 128
        %v732 = vpop.trf.xlu0
        %v733 = vpop.trf.xlu0
        %v734 = vpop.trf.xlu0
        %v735 = vpop.trf.xlu0
        %v736 = vpop.trf.xlu0
        %v737 = vpop.trf.xlu0
        %v738 = vpop.trf.xlu0
        %v739 = vpop.trf.xlu0
        %740 = vxpose.xlu0.c.b16.start [1/8] %v638, 128
        %741 = vxpose.xlu0.c.b16.cont [2/8] 0, 128
        %742 = vxpose.xlu0.c.b16.cont [3/8] 0, 128
        %743 = vxpose.xlu0.c.b16.cont [4/8] 0, 128
        %744 = vxpose.xlu0.c.b16.cont [5/8] 0, 128
        %745 = vxpose.xlu0.c.b16.cont [6/8] 0, 128
        %746 = vxpose.xlu0.c.b16.cont [7/8] 0, 128
        %747 = vxpose.xlu0.c.b16.end [8/8] 0, 128
        %v748 = vpop.trf.xlu0
        %v749 = vpop.trf.xlu0
        %v750 = vpop.trf.xlu0
        %v751 = vpop.trf.xlu0
        %v752 = vpop.trf.xlu0
        %v753 = vpop.trf.xlu0
        %v754 = vpop.trf.xlu0
        %v755 = vpop.trf.xlu0
        %756 = vxpose.xlu0.c.b16.start [1/8] %v642, 128
        %757 = vxpose.xlu0.c.b16.cont [2/8] 0, 128
        %758 = vxpose.xlu0.c.b16.cont [3/8] 0, 128
        %759 = vxpose.xlu0.c.b16.cont [4/8] 0, 128
        %760 = vxpose.xlu0.c.b16.cont [5/8] 0, 128
        %761 = vxpose.xlu0.c.b16.cont [6/8] 0, 128
        %762 = vxpose.xlu0.c.b16.cont [7/8] 0, 128
        %763 = vxpose.xlu0.c.b16.end [8/8] 0, 128
        %v764 = vpop.trf.xlu0
        %v765 = vpop.trf.xlu0
        %v766 = vpop.trf.xlu0
        %v767 = vpop.trf.xlu0
        %v768 = vpop.trf.xlu0
        %v769 = vpop.trf.xlu0
        %v770 = vpop.trf.xlu0
        %v771 = vpop.trf.xlu0
        %v772 = vrot.slane %v716, 4
        %v773 = vsel %vm314, %v772, %v652
        %v775 = vunpack.c.l.s4 1983009808
        %v776 = vunpack.c.0.s8 %v775
        %v777 = vperm.slane %v773, %v776
        %v778 = vrot.slane %v748, 4
        %v779 = vsel %vm314, %v778, %v684
        %v781 = vunpack.c.l.s4 1983009808
        %v782 = vunpack.c.0.s8 %v781
        %v783 = vperm.slane %v779, %v782
        %v784 = vrot.slane %v783, 4
        %v785 = vsel %vm314, %v784, %v777
        %v787 = vunpack.c.l.s4 1934713408
        %v788 = vunpack.c.0.s8 %v787
        %v789 = vperm.slane %v785, %v788
        %v790 = vrot.slane %v789, 4
        %v791 = vsel %vm314, 0, %v790
        %v792 = vrot.slane %v732, 4
        %v793 = vsel %vm314, %v792, %v668
        %v795 = vunpack.c.l.s4 1983009808
        %v796 = vunpack.c.0.s8 %v795
        %v797 = vperm.slane %v793, %v796
        %v798 = vrot.slane %v764, 4
        %v799 = vsel %vm314, %v798, %v700
        %v801 = vunpack.c.l.s4 1983009808
        %v802 = vunpack.c.0.s8 %v801
        %v803 = vperm.slane %v799, %v802
        %v804 = vrot.slane %v803, 4
        %v805 = vsel %vm314, %v804, %v797
        %v807 = vunpack.c.l.s4 1934713408
        %v808 = vunpack.c.0.s8 %v807
        %v809 = vperm.slane %v805, %v808
        %v810 = vrot.slane %v809, 4
        %v811 = vsel %vm314, 0, %v810
        %v814 = vpack.i.b16 %v809, %v789
        %v816 = vshrl.u32 %v789, 16
        %v817 = vshrl.u32 %v809, 16
        %v818 = vpack.i.b16 %v817, %v816
        %v822 = vpack.i.b16 %v811, %v791
        %v824 = vshrl.u32 %v791, 16
        %v825 = vshrl.u32 %v811, 16
        %v826 = vpack.i.b16 %v825, %v824
        %vm828 = vcmask 60416
        %829 = vst.msk [vmem:[%s235] sm:$0xf] %vm828, %v814
        %830 = vst.msk [vmem:[%s235 + $0x4] sm:$0xf] %vm828, %v818
        %831 = vst.msk [vmem:[%s235 + $0x8] sm:$0xf] %vm828, %v822
        %832 = vst.msk [vmem:[%s235 + $0xc] sm:$0xf] %vm828, %v826
        %v833 = vsel %vm314, %v400, %v393
        %v835 = vunpack.c.l.s4 1983009808
        %v836 = vunpack.c.0.s8 %v835
        %v837 = vperm.slane %v833, %v836
        %v838 = vrot.slane %v401, 4
        %v839 = vsel %vm314, %v838, %v399
        %v841 = vunpack.c.l.s4 1983009808
        %v842 = vunpack.c.0.s8 %v841
        %v843 = vperm.slane %v839, %v842
        %v844 = vrot.slane %v843, 4
        %v845 = vsel %vm314, %v844, %v837
        %v847 = vunpack.c.l.s4 1934713408
        %v848 = vunpack.c.0.s8 %v847
        %v849 = vperm.slane %v845, %v848
        %v850 = vrot.slane %v849, 4
        %v851 = vsel %vm314, 0, %v850
        %v852 = vsel %vm314, %v426, %v419
        %v854 = vunpack.c.l.s4 1983009808
        %v855 = vunpack.c.0.s8 %v854
        %v856 = vperm.slane %v852, %v855
        %v857 = vrot.slane %v427, 4
        %v858 = vsel %vm314, %v857, %v425
        %v860 = vunpack.c.l.s4 1983009808
        %v861 = vunpack.c.0.s8 %v860
        %v862 = vperm.slane %v858, %v861
        %v863 = vrot.slane %v862, 4
        %v864 = vsel %vm314, %v863, %v856
        %v866 = vunpack.c.l.s4 1934713408
        %v867 = vunpack.c.0.s8 %v866
        %v868 = vperm.slane %v864, %v867
        %v869 = vrot.slane %v868, 4
        %v870 = vsel %vm314, 0, %v869
        %v873 = vpack.i.b16 %v868, %v849
        %v875 = vshrl.u32 %v849, 16
        %v876 = vshrl.u32 %v868, 16
        %v877 = vpack.i.b16 %v876, %v875
        %v881 = vpack.i.b16 %v870, %v851
        %v883 = vshrl.u32 %v851, 16
        %v884 = vshrl.u32 %v870, 16
        %v885 = vpack.i.b16 %v884, %v883
        %887 = vst.msk [vmem:[%s242] sm:$0xf] %vm828, %v873
        %888 = vst.msk [vmem:[%s242 + $0x4] sm:$0xf] %vm828, %v877
        %889 = vst.msk [vmem:[%s242 + $0x8] sm:$0xf] %vm828, %v881
        %890 = vst.msk [vmem:[%s242 + $0xc] sm:$0xf] %vm828, %v885
        %s891 = sand.u32 %s102, 1
        %s892 = scalar_lea.sflag [#allocation4], %s891
        %s893 = sand.u32 %s102, 1
        %s894 = smul.addr %s893, 16
        %s895 = scalar_lea.vmem [#allocation7], %s894
        %s896 = sand.u32 %s128, 1
        %s897 = scalar_lea.sflag [#allocation9], %s896
        %s898 = sand.u32 %s128, 1
        %s899 = smul.addr %s898, 16
        %s900 = scalar_lea.vmem [#allocation8], %s899
        // Predicated region
        $region41: #{tpu_custom_call.1} parent=31 // pred_check
          %p901 = pneg %p112
        $region42: #{tpu_custom_call.1} parent=31 // pred_check_branch
          %903 = sbr.rel (%p901) target = $region44
        $region43: #{tpu_custom_call.1} parent=31 // pred_region
          %905 = vsyncadd %s892, 0
          %s906 = smul.addr %s26, 4
          %s907 = smul.addr %s906, 4
          %s908 = scalar_lea.hbm %s3, %s907
          %s909 = sshll.u32 %s895, 4
          %s910 = int_to_ptr.vmem [resolvable:$true] %s909
          %s911 = sshll.u32 %s908, 4
          %s912 = int_to_ptr.hbm [resolvable:$true] %s911
          %917 = dma.vmem_to_hbm [thread:$0]  %s910, 256, %s912, %s892, 64, 64, 4
        $region44: #{tpu_custom_call.1} parent=31 // pred_fallthru
          _
        // Predicated region
        $region45: #{tpu_custom_call.1} parent=31 // pred_check
          %p918 = pneg %p138
        $region46: #{tpu_custom_call.1} parent=31 // pred_check_branch
          %920 = sbr.rel (%p918) target = $region48
        $region47: #{tpu_custom_call.1} parent=31 // pred_region
          %922 = vsyncadd %s897, 0
          %s923 = smul.addr %s26, 4
          %s924 = smul.addr %s923, 4
          %s925 = scalar_lea.hbm %s4, %s924
          %s926 = sshll.u32 %s900, 4
          %s927 = int_to_ptr.vmem [resolvable:$true] %s926
          %s928 = sshll.u32 %s925, 4
          %s929 = int_to_ptr.hbm [resolvable:$true] %s928
          %934 = dma.vmem_to_hbm [thread:$0]  %s927, 256, %s929, %s897, 64, 64, 4
        $region48: #{tpu_custom_call.1} parent=31 // pred_fallthru
          _
      $region32: #{tpu_custom_call.1} parent=5 // pred_fallthru
        _
      %p935 = scmp.le.s32.totalorder 2, %s21
      // Predicated region
      $region49: #{tpu_custom_call.1} parent=5 // pred_check
        %p936 = pneg %p935
      $region50: #{tpu_custom_call.1} parent=5 // pred_check_branch
        %938 = sbr.rel (%p936) target = $region52
      $region51: #{tpu_custom_call.1} parent=5 // pred_region
        %s939 = ssub.s32 %s21, 2
        // Predicated region
        $region53: #{tpu_custom_call.1} parent=51 // pred_check
          %p940 = pneg %p118
        $region54: #{tpu_custom_call.1} parent=51 // pred_check_branch
          %942 = sbr.rel (%p940) target = $region56
        $region55: #{tpu_custom_call.1} parent=51 // pred_region
          %s943 = sand.u32 %s103, 1
          %s944 = scalar_lea.sflag [#allocation4], %s943
          %s945 = sand.u32 %s103, 1
          %s946 = smul.addr %s945, 16
          %s947 = scalar_lea.vmem [#allocation7], %s946
          %949 = dma.done %s944, 256
        $region56: #{tpu_custom_call.1} parent=51 // pred_fallthru
          _
        // Predicated region
        $region57: #{tpu_custom_call.1} parent=51 // pred_check
          %p950 = pneg %p144
        $region58: #{tpu_custom_call.1} parent=51 // pred_check_branch
          %952 = sbr.rel (%p950) target = $region60
        $region59: #{tpu_custom_call.1} parent=51 // pred_region
          %s953 = sand.u32 %s129, 1
          %s954 = scalar_lea.sflag [#allocation9], %s953
          %s955 = sand.u32 %s129, 1
          %s956 = smul.addr %s955, 16
          %s957 = scalar_lea.vmem [#allocation8], %s956
          %959 = dma.done %s954, 256
        $region60: #{tpu_custom_call.1} parent=51 // pred_fallthru
          _
      $region52: #{tpu_custom_call.1} parent=5 // pred_fallthru
        _
    $region6: #{tpu_custom_call.1} parent=1 // loop_footer
      %s25 = sadd.s32 1, %s21
    $region7: #{tpu_custom_call.1} parent=1 // loop_footer_branch
      %20 = sbr.rel target = $region3
    $region8: #{tpu_custom_call.1} parent=1 // loop_exit
      _
    %960 = vsyncpa [#allocation3], 1
    %s961 = scalar_lea.sflag [#allocation3], 1
    %962 = vsyncpa %s961, 1
    %963 = vsyncpa [#allocation6], 1
    %964 = vsyncpa [#allocation4], 1
    %s965 = scalar_lea.sflag [#allocation4], 1
    %966 = vsyncpa %s965, 1
    %967 = vsyncpa [#allocation9], 1
    %s968 = scalar_lea.sflag [#allocation9], 1
    %969 = vsyncpa %s968, 1

// kernel: tpu_custom_call.1
$region0: #{tpu_custom_call.1}
  #allocation0 [shape = 'u32[]', space=smem, size = 0x4, offset = 0x4, fixed_abs, tag = 'smem constant byte address 0x4 - core index']
  #allocation1 [shape = 'u32[72,128]{1,0:T(1,128)}', space=vmem, size = 0x9000, scoped, tag = 'internal scratch']
  %s0 = inlined_call_operand.hbm [shape: f32[2,8,32], index: 0, kind: input, shape index: {}]
  %s1 = inlined_call_operand.hbm [shape: bf16[32,64], index: 1, kind: input, shape index: {}]
  %s2 = inlined_call_operand.vmem [shape: f32[1,64], index: 2, kind: input, shape index: {}]
  %s3 = inlined_call_operand.hbm [shape: bf16[2,4,8,8], index: 3, kind: output, shape index: {0}]
  %s4 = inlined_call_operand.hbm [shape: bf16[2,4,8,8], index: 4, kind: output, shape index: {1}]
  %5 = xla_tuple %s3, %s4
  %s6 = sld [smem:[#allocation0]]
  $region61: #{tpu_custom_call.1} parent=0
    _
  %s8 = ssub.s32 1, %s6
  %s9 = scalar_select 0, %s8, %s6
  $region1: #{tpu_custom_call.1} parent=0
    #allocation2 [shape = 'u8[8192]{0}', space=vmem, size = 0x2000, scoped, tag = 'input window, operand 0']
    #allocation3 [shape = 's32[2]{0}', space=sflag, size = 0x8, scoped, tag = 'scoped memory for tpu_custom_call.1']
    #allocation4 [shape = 's32[2]{0}', space=sflag, size = 0x8, scoped, tag = 'scoped memory for tpu_custom_call.1']
    #allocation5 [shape = 'u8[8192]{0}', space=vmem, size = 0x2000, scoped, tag = 'input window, operand 1, single buffered']
    #allocation6 [shape = 's32[1]{0}', space=sflag, size = 0x4, scoped, tag = 'scoped memory for tpu_custom_call.1']
    #allocation7 [shape = 'u8[16384]{0}', space=vmem, size = 0x4000, scoped, tag = 'output window, operand 0']
    #allocation8 [shape = 'u8[16384]{0}', space=vmem, size = 0x4000, scoped, tag = 'output window, operand 1']
    #allocation9 [shape = 's32[2]{0}', space=sflag, size = 0x8, scoped, tag = 'scoped memory for tpu_custom_call.1']
    %10 = vsyncpa [#allocation3], 0
    %s11 = scalar_lea.sflag [#allocation3], 1
    %12 = vsyncpa %s11, 0
    %13 = vsyncpa [#allocation6], 0
    %14 = vsyncpa [#allocation4], 0
    %s15 = scalar_lea.sflag [#allocation4], 1
    %16 = vsyncpa %s15, 0
    %17 = vsyncpa [#allocation9], 0
    %s18 = scalar_lea.sflag [#allocation9], 1
    %19 = vsyncpa %s18, 0
    loop: start=0, step=1, limit=4
    $region2: #{tpu_custom_call.1} parent=1 // loop_pre_header
      _
    $region3: #{tpu_custom_call.1} parent=1 // loop_header
      %s21 = sphi 0, %s25
      %p22 = scmp.ge.s32.totalorder %s21, 4
      %s31 = sphi 0, %s33
      %s34 = sphi 0, %s31
      %s35 = sphi 0, %s34
      %s51 = sphi 0, %s35
      %s55 = sphi 0, %s55
      %s57 = sphi 0, %s55
      %s58 = sphi 0, %s57
      %s72 = sphi 0, %s58
      %s76 = sphi 0, %s76
      %s78 = sphi 0, %s76
      %s79 = sphi 0, %s78
      %s93 = sphi 0, %s79
      %s99 = sphi 0, %s101
      %s102 = sphi 0, %s99
      %s103 = sphi 0, %s102
      %s119 = sphi 0, %s103
      %s125 = sphi 0, %s127
      %s128 = sphi 0, %s125
      %s129 = sphi 0, %s128
      %s145 = sphi 0, %s129
    $region4: #{tpu_custom_call.1} parent=1 // loop_header_branch
      %24 = sbr.rel (%p22) target = $region8
    $region5: #{tpu_custom_call.1} parent=1 // loop_body
      %s26 = ssub.s32 %s21, 1
      %s27 = ssub.s32 %s21, 2
      %s28 = sadd.s32 %s21, 1
      %s29 = ssub.s32 %s21, %s28
      %p30 = scmp.eq.s32.totalorder %s29, 0
      %s32 = sadd.s32 %s31, 1
      %s33 = scalar_select %p30, %s31, %s32
      %p36 = pneg %p30
      %p37 = scmp.eq.s32.totalorder %s21, 1
      %p38 = por %p36, %p37
      %p39 = scmp.ne.s32.totalorder %s31, %s34
      %p40 = scmp.eq.s32.totalorder %s21, 0
      %p41 = por %p39, %p40
      %p42 = scmp.ne.s32.totalorder %s31, %s34
      %p43 = scmp.eq.s32.totalorder %s26, 1
      %p44 = por %p42, %p43
      %p45 = scmp.ne.s32.totalorder %s34, %s35
      %p46 = scmp.eq.s32.totalorder %s26, 0
      %p47 = por %p45, %p46
      %p48 = scmp.ne.s32.totalorder %s34, %s35
      %p49 = scmp.eq.s32.totalorder %s27, 1
      %p50 = por %p48, %p49
      %p52 = scmp.ne.s32.totalorder %s35, %s51
      %p53 = scmp.eq.s32.totalorder %s27, 0
      %p54 = por %p52, %p53
      %s56 = sadd.s32 %s55, 1
      %p59 = scmp.eq.s32.totalorder %s21, 1
      %p60 = scmp.ne.s32.totalorder %s55, %s57
      %p61 = scmp.eq.s32.totalorder %s21, 0
      %p62 = por %p60, %p61
      %p63 = scmp.ne.s32.totalorder %s55, %s57
      %p64 = scmp.eq.s32.totalorder %s26, 1
      %p65 = por %p63, %p64
      %p66 = scmp.ne.s32.totalorder %s57, %s58
      %p67 = scmp.eq.s32.totalorder %s26, 0
      %p68 = por %p66, %p67
      %p69 = scmp.ne.s32.totalorder %s57, %s58
      %p70 = scmp.eq.s32.totalorder %s27, 1
      %p71 = por %p69, %p70
      %p73 = scmp.ne.s32.totalorder %s58, %s72
      %p74 = scmp.eq.s32.totalorder %s27, 0
      %p75 = por %p73, %p74
      %s77 = sadd.s32 %s76, 1
      %p80 = scmp.eq.s32.totalorder %s21, 1
      %p81 = scmp.ne.s32.totalorder %s76, %s78
      %p82 = scmp.eq.s32.totalorder %s21, 0
      %p83 = por %p81, %p82
      %p84 = scmp.ne.s32.totalorder %s76, %s78
      %p85 = scmp.eq.s32.totalorder %s26, 1
      %p86 = por %p84, %p85
      %p87 = scmp.ne.s32.totalorder %s78, %s79
      %p88 = scmp.eq.s32.totalorder %s26, 0
      %p89 = por %p87, %p88
      %p90 = scmp.ne.s32.totalorder %s78, %s79
      %p91 = scmp.eq.s32.totalorder %s27, 1
      %p92 = por %p90, %p91
      %p94 = scmp.ne.s32.totalorder %s79, %s93
      %p95 = scmp.eq.s32.totalorder %s27, 0
      %p96 = por %p94, %p95
      %s97 = ssub.s32 %s21, %s28
      %p98 = scmp.eq.s32.totalorder %s97, 0
      %s100 = sadd.s32 %s99, 1
      %s101 = scalar_select %p98, %s99, %s100
      %p104 = pneg %p98
      %p105 = scmp.eq.s32.totalorder %s21, 1
      %p106 = por %p104, %p105
      %p107 = scmp.ne.s32.totalorder %s99, %s102
      %p108 = scmp.eq.s32.totalorder %s21, 0
      %p109 = por %p107, %p108
      %p110 = scmp.ne.s32.totalorder %s99, %s102
      %p111 = scmp.eq.s32.totalorder %s26, 1
      %p112 = por %p110, %p111
      %p113 = scmp.ne.s32.totalorder %s102, %s103
      %p114 = scmp.eq.s32.totalorder %s26, 0
      %p115 = por %p113, %p114
      %p116 = scmp.ne.s32.totalorder %s102, %s103
      %p117 = scmp.eq.s32.totalorder %s27, 1
      %p118 = por %p116, %p117
      %p120 = scmp.ne.s32.totalorder %s103, %s119
      %p121 = scmp.eq.s32.totalorder %s27, 0
      %p122 = por %p120, %p121
      %s123 = ssub.s32 %s21, %s28
      %p124 = scmp.eq.s32.totalorder %s123, 0
      %s126 = sadd.s32 %s125, 1
      %s127 = scalar_select %p124, %s125, %s126
      %p130 = pneg %p124
      %p131 = scmp.eq.s32.totalorder %s21, 1
      %p132 = por %p130, %p131
      %p133 = scmp.ne.s32.totalorder %s125, %s128
      %p134 = scmp.eq.s32.totalorder %s21, 0
      %p135 = por %p133, %p134
      %p136 = scmp.ne.s32.totalorder %s125, %s128
      %p137 = scmp.eq.s32.totalorder %s26, 1
      %p138 = por %p136, %p137
      %p139 = scmp.ne.s32.totalorder %s128, %s129
      %p140 = scmp.eq.s32.totalorder %s26, 0
      %p141 = por %p139, %p140
      %p142 = scmp.ne.s32.totalorder %s128, %s129
      %p143 = scmp.eq.s32.totalorder %s27, 1
      %p144 = por %p142, %p143
      %p146 = scmp.ne.s32.totalorder %s129, %s145
      %p147 = scmp.eq.s32.totalorder %s27, 0
      %p148 = por %p146, %p147
      %p149 = scmp.le.s32.totalorder 1, %s21
      %p150 = scmp.lt.s32.totalorder %s21, 3
      %p151 = pnand %p149, %p150
      %p152 = pneg %p151
      // Predicated region
      $region9: #{tpu_custom_call.1} parent=5 // pred_check
        _
      $region10: #{tpu_custom_call.1} parent=5 // pred_check_branch
        %154 = sbr.rel (%p151) target = $region12
      $region11: #{tpu_custom_call.1} parent=5 // pred_region
        %s155 = ssub.s32 %s21, 1
        // Predicated region
        $region13: #{tpu_custom_call.1} parent=11 // pred_check
          %p156 = pneg %p68
        $region14: #{tpu_custom_call.1} parent=11 // pred_check_branch
          %158 = sbr.rel (%p156) target = $region16
        $region15: #{tpu_custom_call.1} parent=11 // pred_region
          %160 = vsyncadd [#allocation6], 0
          %s161 = sshll.u32 %s1, 4
          %s162 = int_to_ptr.hbm [resolvable:$true] %s161
          %s163 = sshll.u32 [#allocation5], 4
          %s164 = int_to_ptr.vmem [resolvable:$true] %s163
          %169 = dma.hbm_to_vmem [thread:$0]  %s162, 256, %s164, [#allocation6], 64, 64, 4
        $region16: #{tpu_custom_call.1} parent=11 // pred_fallthru
          _
        // Predicated region
        $region17: #{tpu_custom_call.1} parent=11 // pred_check
          %p170 = pneg %p89
        $region18: #{tpu_custom_call.1} parent=11 // pred_check_branch
          %172 = sbr.rel (%p170) target = $region20
        $region19: #{tpu_custom_call.1} parent=11 // pred_region
          _
        $region20: #{tpu_custom_call.1} parent=11 // pred_fallthru
          _
      $region12: #{tpu_custom_call.1} parent=5 // pred_fallthru
        _
      %p173 = scmp.lt.s32.totalorder %s21, 2
      // Predicated region
      $region21: #{tpu_custom_call.1} parent=5 // pred_check
        %p174 = pneg %p173
      $region22: #{tpu_custom_call.1} parent=5 // pred_check_branch
        %176 = sbr.rel (%p174) target = $region24
      $region23: #{tpu_custom_call.1} parent=5 // pred_region
        // Predicated region
        $region25: #{tpu_custom_call.1} parent=23 // pred_check
          %p177 = pneg %p41
        $region26: #{tpu_custom_call.1} parent=23 // pred_check_branch
          %179 = sbr.rel (%p177) target = $region28
        $region27: #{tpu_custom_call.1} parent=23 // pred_region
          %s180 = sand.u32 %s31, 1
          %s181 = scalar_lea.sflag [#allocation3], %s180
          %s182 = sand.u32 %s31, 1
          %s183 = smul.addr %s182, 8
          %s184 = scalar_lea.vmem [#allocation2], %s183
          %186 = vsyncadd %s181, 0
          %s187 = smul.addr %s21, 8
          %s188 = scalar_lea.hbm %s0, %s187
          %s190 = sshll.u32 %s188, 4
          %s191 = int_to_ptr.hbm [resolvable:$true] %s190
          %s192 = sshll.u32 %s184, 4
          %s193 = int_to_ptr.vmem [resolvable:$true] %s192
          %195 = dma.hbm_to_vmem [thread:$0]  %s191, 128, %s193, %s181
        $region28: #{tpu_custom_call.1} parent=23 // pred_fallthru
          _
      $region24: #{tpu_custom_call.1} parent=5 // pred_fallthru
        _
      %p196 = scmp.le.s32.totalorder 1, %s21
      %p197 = scmp.lt.s32.totalorder %s21, 3
      %p198 = pnand %p196, %p197
      %p199 = pneg %p198
      // Predicated region
      $region29: #{tpu_custom_call.1} parent=5 // pred_check
        _
      $region30: #{tpu_custom_call.1} parent=5 // pred_check_branch
        %201 = sbr.rel (%p198) target = $region32
      $region31: #{tpu_custom_call.1} parent=5 // pred_region
        %s202 = ssub.s32 %s21, 1
        %s203 = sand.u32 %s34, 1
        %s204 = scalar_lea.sflag [#allocation3], %s203
        %s205 = sand.u32 %s34, 1
        %s206 = smul.addr %s205, 8
        %s207 = scalar_lea.vmem [#allocation2], %s206
        // Predicated region
        $region33: #{tpu_custom_call.1} parent=31 // pred_check
          %p208 = pneg %p47
        $region34: #{tpu_custom_call.1} parent=31 // pred_check_branch
          %210 = sbr.rel (%p208) target = $region36
        $region35: #{tpu_custom_call.1} parent=31 // pred_region
          %212 = dma.done %s204, 128
        $region36: #{tpu_custom_call.1} parent=31 // pred_fallthru
          _
        // Predicated region
        $region37: #{tpu_custom_call.1} parent=31 // pred_check
          %p213 = pneg %p68
        $region38: #{tpu_custom_call.1} parent=31 // pred_check_branch
          %215 = sbr.rel (%p213) target = $region40
        $region39: #{tpu_custom_call.1} parent=31 // pred_region
          %217 = dma.done [#allocation6], 256
        $region40: #{tpu_custom_call.1} parent=31 // pred_fallthru
          _
        %s218 = sand.u32 %s34, 1
        %s219 = scalar_lea.sflag [#allocation3], %s218
        %s220 = sand.u32 %s34, 1
        %s221 = smul.addr %s220, 8
        %s222 = scalar_lea.vmem [#allocation2], %s221
        %p223 = pneg %p47
        %p224 = pneg %p44
        %p225 = pneg %p68
        %p226 = pneg %p65
        %p227 = pneg %p89
        %p228 = pneg %p86
        %p229 = pneg %p115
        %p230 = pneg %p112
        %s231 = sand.u32 %s102, 1
        %s232 = scalar_lea.sflag [#allocation4], %s231
        %s233 = sand.u32 %s102, 1
        %s234 = smul.addr %s233, 16
        %s235 = scalar_lea.vmem [#allocation7], %s234
        %p236 = pneg %p141
        %p237 = pneg %p138
        %s238 = sand.u32 %s128, 1
        %s239 = scalar_lea.sflag [#allocation9], %s238
        %s240 = sand.u32 %s128, 1
        %s241 = smul.addr %s240, 16
        %s242 = scalar_lea.vmem [#allocation8], %s241
        %v244 = vld [vmem:[%s207] sm:$0xff]
        %v245 = vpack.c.bf16 %v244, %v244
        %v246 = vld [vmem:[#allocation5] sm:$0xf]
        %v247 = vld [vmem:[#allocation5 + $0x4] sm:$0xf]
        %v248 = vld [vmem:[#allocation5 + $0x8] sm:$0xf]
        %v249 = vld [vmem:[#allocation5 + $0xc] sm:$0xf]
        %v250 = vld [vmem:[%s2] sm:$0x1]
        %v252 = vperm.slane %v250, 0
        %v258 = vunpack.c.l.b16 %v246
        %v259 = vunpack.c.l.b16 %v247
        %v260 = vunpack.c.l.b16 %v248
        %v261 = vunpack.c.l.b16 %v249
        %v262 = vpack.c.b16 %v259, %v258
        %v263 = vpack.c.b16 %v261, %v260
        %vm266 = vcmask 261120
        %v268 = vsel %vm266, %v245, 0
        %270 = vmatpush.bf16.msra.mxu0 0
        %271 = vmatpush.bf16.msra.mxu0 0
        %272 = vmatpush.bf16.msra.mxu0 0
        %273 = vmatpush.bf16.msra.mxu0 0
        %274 = vmatpush.bf16.msra.mxu0 0
        %275 = vmatpush.bf16.msra.mxu0 0
        %276 = vmatpush.bf16.msra.mxu0 %v263
        %277 = vmatpush.bf16.msra.mxu0 %v262
        %278 = vmatmul.bf16.gmra.mxu0 %v268
        %v279 = vpop.f32.mrf.mxu0
        %v280 = vadd.f32 %v252, %v279
        %v281 = vpop.f32.mrf.mxu0
        %282 = vdwg.mxu0
        %v283 = vpack.c.bf16 %v280, %v280
        %285 = vrot.lane.b32.xlu0 %v283, 120
        %v286 = vpop.permute.xlu0 %285
        %287 = vrot.lane.b32.xlu0 %v283, 112
        %v288 = vpop.permute.xlu0 %287
        %289 = vrot.lane.b32.xlu0 %v283, 104
        %v290 = vpop.permute.xlu0 %289
        %v293 = vpack.i.b16 %v286, %v283
        %v294 = vshrl.u32 %v283, 16
        %v295 = vshrl.u32 %v286, 16
        %v296 = vpack.i.b16 %v295, %v294
        %v299 = vpack.i.b16 %v290, %v288
        %v300 = vshrl.u32 %v288, 16
        %v301 = vshrl.u32 %v290, 16
        %v302 = vpack.i.b16 %v301, %v300
        %v305 = vunpack.c.l.s4 1983009808
        %v306 = vunpack.c.0.s8 %v305
        %v307 = vperm.slane %v293, %v306
        %v310 = vunpack.c.l.s4 1983009808
        %v311 = vunpack.c.0.s8 %v310
        %v312 = vperm.slane %v299, %v311
        %v313 = vrot.slane %v312, 4
        %vm314 = vcmask 1047556
        %v315 = vsel %vm314, %v313, %v307
        %v316 = vrot.slane %v307, 4
        %v317 = vsel %vm314, %v312, %v316
        %v319 = vunpack.c.l.s4 1934713408
        %v320 = vunpack.c.0.s8 %v319
        %v321 = vperm.slane %v315, %v320
        %v323 = vunpack.c.l.s4 1934713408
        %v324 = vunpack.c.0.s8 %v323
        %v325 = vperm.slane %v317, %v324
        %v326 = vrot.slane %v321, 4
        %v327 = vsel %vm314, 0, %v326
        %v328 = vrot.slane %v325, 4
        %v329 = vsel %vm314, 0, %v328
        %v332 = vunpack.c.l.s4 1983009808
        %v333 = vunpack.c.0.s8 %v332
        %v334 = vperm.slane %v296, %v333
        %v337 = vunpack.c.l.s4 1983009808
        %v338 = vunpack.c.0.s8 %v337
        %v339 = vperm.slane %v302, %v338
        %v340 = vrot.slane %v339, 4
        %v341 = vsel %vm314, %v340, %v334
        %v342 = vrot.slane %v334, 4
        %v343 = vsel %vm314, %v339, %v342
        %v345 = vunpack.c.l.s4 1934713408
        %v346 = vunpack.c.0.s8 %v345
        %v347 = vperm.slane %v341, %v346
        %v349 = vunpack.c.l.s4 1934713408
        %v350 = vunpack.c.0.s8 %v349
        %v351 = vperm.slane %v343, %v350
        %v352 = vrot.slane %v347, 4
        %v353 = vsel %vm314, 0, %v352
        %v354 = vrot.slane %v351, 4
        %v355 = vsel %vm314, 0, %v354
        %356 = vrot.lane.b32.xlu0 %v283, 96
        %v357 = vpop.permute.xlu0 %356
        %358 = vrot.lane.b32.xlu0 %v286, 96
        %v359 = vpop.permute.xlu0 %358
        %360 = vrot.lane.b32.xlu0 %v288, 96
        %v361 = vpop.permute.xlu0 %360
        %362 = vrot.lane.b32.xlu0 %v290, 96
        %v363 = vpop.permute.xlu0 %362
        %v366 = vpack.i.b16 %v359, %v357
        %v367 = vshrl.u32 %v357, 16
        %v368 = vshrl.u32 %v359, 16
        %v369 = vpack.i.b16 %v368, %v367
        %v372 = vpack.i.b16 %v363, %v361
        %v373 = vshrl.u32 %v361, 16
        %v374 = vshrl.u32 %v363, 16
        %v375 = vpack.i.b16 %v374, %v373
        %v378 = vunpack.c.l.s4 1983009808
        %v379 = vunpack.c.0.s8 %v378
        %v380 = vperm.slane %v366, %v379
        %v383 = vunpack.c.l.s4 1983009808
        %v384 = vunpack.c.0.s8 %v383
        %v385 = vperm.slane %v372, %v384
        %v386 = vrot.slane %v385, 4
        %v387 = vsel %vm314, %v386, %v380
        %v388 = vrot.slane %v380, 4
        %v389 = vsel %vm314, %v385, %v388
        %v391 = vunpack.c.l.s4 1934713408
        %v392 = vunpack.c.0.s8 %v391
        %v393 = vperm.slane %v387, %v392
        %v395 = vunpack.c.l.s4 1934713408
        %v396 = vunpack.c.0.s8 %v395
        %v397 = vperm.slane %v389, %v396
        %v398 = vrot.slane %v393, 4
        %v399 = vsel %vm314, 0, %v398
        %v400 = vrot.slane %v397, 4
        %v401 = vsel %vm314, 0, %v400
        %v404 = vunpack.c.l.s4 1983009808
        %v405 = vunpack.c.0.s8 %v404
        %v406 = vperm.slane %v369, %v405
        %v409 = vunpack.c.l.s4 1983009808
        %v410 = vunpack.c.0.s8 %v409
        %v411 = vperm.slane %v375, %v410
        %v412 = vrot.slane %v411, 4
        %v413 = vsel %vm314, %v412, %v406
        %v414 = vrot.slane %v406, 4
        %v415 = vsel %vm314, %v411, %v414
        %v417 = vunpack.c.l.s4 1934713408
        %v418 = vunpack.c.0.s8 %v417
        %v419 = vperm.slane %v413, %v418
        %v421 = vunpack.c.l.s4 1934713408
        %v422 = vunpack.c.0.s8 %v421
        %v423 = vperm.slane %v415, %v422
        %v424 = vrot.slane %v419, 4
        %v425 = vsel %vm314, 0, %v424
        %v426 = vrot.slane %v423, 4
        %v427 = vsel %vm314, 0, %v426
        %428 = vxpose.xlu0.c.b16.start [1/8] %v321, 128
        %429 = vxpose.xlu0.c.b16.cont [2/8] 0, 128
        %430 = vxpose.xlu0.c.b16.cont [3/8] 0, 128
        %431 = vxpose.xlu0.c.b16.cont [4/8] 0, 128
        %432 = vxpose.xlu0.c.b16.cont [5/8] 0, 128
        %433 = vxpose.xlu0.c.b16.cont [6/8] 0, 128
        %434 = vxpose.xlu0.c.b16.cont [7/8] 0, 128
        %435 = vxpose.xlu0.c.b16.end [8/8] 0, 128
        %v436 = vpop.trf.xlu0
        %v437 = vpop.trf.xlu0
        %v438 = vpop.trf.xlu0
        %v439 = vpop.trf.xlu0
        %v440 = vpop.trf.xlu0
        %v441 = vpop.trf.xlu0
        %v442 = vpop.trf.xlu0
        %v443 = vpop.trf.xlu0
        %444 = vxpose.xlu0.c.b16.start [1/8] %v347, 128
        %445 = vxpose.xlu0.c.b16.cont [2/8] 0, 128
        %446 = vxpose.xlu0.c.b16.cont [3/8] 0, 128
        %447 = vxpose.xlu0.c.b16.cont [4/8] 0, 128
        %448 = vxpose.xlu0.c.b16.cont [5/8] 0, 128
        %449 = vxpose.xlu0.c.b16.cont [6/8] 0, 128
        %450 = vxpose.xlu0.c.b16.cont [7/8] 0, 128
        %451 = vxpose.xlu0.c.b16.end [8/8] 0, 128
        %v452 = vpop.trf.xlu0
        %v453 = vpop.trf.xlu0
        %v454 = vpop.trf.xlu0
        %v455 = vpop.trf.xlu0
        %v456 = vpop.trf.xlu0
        %v457 = vpop.trf.xlu0
        %v458 = vpop.trf.xlu0
        %v459 = vpop.trf.xlu0
        %460 = vxpose.xlu0.c.b16.start [1/8] %v327, 128
        %461 = vxpose.xlu0.c.b16.cont [2/8] 0, 128
        %462 = vxpose.xlu0.c.b16.cont [3/8] 0, 128
        %463 = vxpose.xlu0.c.b16.cont [4/8] 0, 128
        %464 = vxpose.xlu0.c.b16.cont [5/8] 0, 128
        %465 = vxpose.xlu0.c.b16.cont [6/8] 0, 128
        %466 = vxpose.xlu0.c.b16.cont [7/8] 0, 128
        %467 = vxpose.xlu0.c.b16.end [8/8] 0, 128
        %v468 = vpop.trf.xlu0
        %v469 = vpop.trf.xlu0
        %v470 = vpop.trf.xlu0
        %v471 = vpop.trf.xlu0
        %v472 = vpop.trf.xlu0
        %v473 = vpop.trf.xlu0
        %v474 = vpop.trf.xlu0
        %v475 = vpop.trf.xlu0
        %476 = vxpose.xlu0.c.b16.start [1/8] %v353, 128
        %477 = vxpose.xlu0.c.b16.cont [2/8] 0, 128
        %478 = vxpose.xlu0.c.b16.cont [3/8] 0, 128
        %479 = vxpose.xlu0.c.b16.cont [4/8] 0, 128
        %480 = vxpose.xlu0.c.b16.cont [5/8] 0, 128
        %481 = vxpose.xlu0.c.b16.cont [6/8] 0, 128
        %482 = vxpose.xlu0.c.b16.cont [7/8] 0, 128
        %483 = vxpose.xlu0.c.b16.end [8/8] 0, 128
        %v484 = vpop.trf.xlu0
        %v485 = vpop.trf.xlu0
        %v486 = vpop.trf.xlu0
        %v487 = vpop.trf.xlu0
        %v488 = vpop.trf.xlu0
        %v489 = vpop.trf.xlu0
        %v490 = vpop.trf.xlu0
        %v491 = vpop.trf.xlu0
        %492 = vxpose.xlu0.c.b16.start [1/8] %v325, 128
        %493 = vxpose.xlu0.c.b16.cont [2/8] 0, 128
        %494 = vxpose.xlu0.c.b16.cont [3/8] 0, 128
        %495 = vxpose.xlu0.c.b16.cont [4/8] 0, 128
        %496 = vxpose.xlu0.c.b16.cont [5/8] 0, 128
        %497 = vxpose.xlu0.c.b16.cont [6/8] 0, 128
        %498 = vxpose.xlu0.c.b16.cont [7/8] 0, 128
        %499 = vxpose.xlu0.c.b16.end [8/8] 0, 128
        %v500 = vpop.trf.xlu0
        %v501 = vpop.trf.xlu0
        %v502 = vpop.trf.xlu0
        %v503 = vpop.trf.xlu0
        %v504 = vpop.trf.xlu0
        %v505 = vpop.trf.xlu0
        %v506 = vpop.trf.xlu0
        %v507 = vpop.trf.xlu0
        %508 = vxpose.xlu0.c.b16.start [1/8] %v351, 128
        %509 = vxpose.xlu0.c.b16.cont [2/8] 0, 128
        %510 = vxpose.xlu0.c.b16.cont [3/8] 0, 128
        %511 = vxpose.xlu0.c.b16.cont [4/8] 0, 128
        %512 = vxpose.xlu0.c.b16.cont [5/8] 0, 128
        %513 = vxpose.xlu0.c.b16.cont [6/8] 0, 128
        %514 = vxpose.xlu0.c.b16.cont [7/8] 0, 128
        %515 = vxpose.xlu0.c.b16.end [8/8] 0, 128
        %v516 = vpop.trf.xlu0
        %v517 = vpop.trf.xlu0
        %v518 = vpop.trf.xlu0
        %v519 = vpop.trf.xlu0
        %v520 = vpop.trf.xlu0
        %v521 = vpop.trf.xlu0
        %v522 = vpop.trf.xlu0
        %v523 = vpop.trf.xlu0
        %524 = vxpose.xlu0.c.b16.start [1/8] %v329, 128
        %525 = vxpose.xlu0.c.b16.cont [2/8] 0, 128
        %526 = vxpose.xlu0.c.b16.cont [3/8] 0, 128
        %527 = vxpose.xlu0.c.b16.cont [4/8] 0, 128
        %528 = vxpose.xlu0.c.b16.cont [5/8] 0, 128
        %529 = vxpose.xlu0.c.b16.cont [6/8] 0, 128
        %530 = vxpose.xlu0.c.b16.cont [7/8] 0, 128
        %531 = vxpose.xlu0.c.b16.end [8/8] 0, 128
        %v532 = vpop.trf.xlu0
        %v533 = vpop.trf.xlu0
        %v534 = vpop.trf.xlu0
        %v535 = vpop.trf.xlu0
        %v536 = vpop.trf.xlu0
        %v537 = vpop.trf.xlu0
        %v538 = vpop.trf.xlu0
        %v539 = vpop.trf.xlu0
        %540 = vxpose.xlu0.c.b16.start [1/8] %v355, 128
        %541 = vxpose.xlu0.c.b16.cont [2/8] 0, 128
        %542 = vxpose.xlu0.c.b16.cont [3/8] 0, 128
        %543 = vxpose.xlu0.c.b16.cont [4/8] 0, 128
        %544 = vxpose.xlu0.c.b16.cont [5/8] 0, 128
        %545 = vxpose.xlu0.c.b16.cont [6/8] 0, 128
        %546 = vxpose.xlu0.c.b16.cont [7/8] 0, 128
        %547 = vxpose.xlu0.c.b16.end [8/8] 0, 128
        %v548 = vpop.trf.xlu0
        %v549 = vpop.trf.xlu0
        %v550 = vpop.trf.xlu0
        %v551 = vpop.trf.xlu0
        %v552 = vpop.trf.xlu0
        %v553 = vpop.trf.xlu0
        %v554 = vpop.trf.xlu0
        %v555 = vpop.trf.xlu0
        %v556 = vrot.slane %v500, 4
        %v557 = vsel %vm314, %v556, %v436
        %v559 = vunpack.c.l.s4 1983009808
        %v560 = vunpack.c.0.s8 %v559
        %v561 = vperm.slane %v557, %v560
        %v562 = vrot.slane %v532, 4
        %v563 = vsel %vm314, %v562, %v468
        %v565 = vunpack.c.l.s4 1983009808
        %v566 = vunpack.c.0.s8 %v565
        %v567 = vperm.slane %v563, %v566
        %v568 = vrot.slane %v567, 4
        %v569 = vsel %vm314, %v568, %v561
        %v570 = vrot.slane %v561, 4
        %v571 = vsel %vm314, %v567, %v570
        %v573 = vunpack.c.l.s4 1934713408
        %v574 = vunpack.c.0.s8 %v573
        %v575 = vperm.slane %v569, %v574
        %v577 = vunpack.c.l.s4 1934713408
        %v578 = vunpack.c.0.s8 %v577
        %v579 = vperm.slane %v571, %v578
        %v580 = vrot.slane %v575, 4
        %v581 = vsel %vm314, 0, %v580
        %v582 = vrot.slane %v579, 4
        %v583 = vsel %vm314, 0, %v582
        %v584 = vrot.slane %v516, 4
        %v585 = vsel %vm314, %v584, %v452
        %v587 = vunpack.c.l.s4 1983009808
        %v588 = vunpack.c.0.s8 %v587
        %v589 = vperm.slane %v585, %v588
        %v590 = vrot.slane %v548, 4
        %v591 = vsel %vm314, %v590, %v484
        %v593 = vunpack.c.l.s4 1983009808
        %v594 = vunpack.c.0.s8 %v593
        %v595 = vperm.slane %v591, %v594
        %v596 = vrot.slane %v595, 4
        %v597 = vsel %vm314, %v596, %v589
        %v598 = vrot.slane %v589, 4
        %v599 = vsel %vm314, %v595, %v598
        %v601 = vunpack.c.l.s4 1934713408
        %v602 = vunpack.c.0.s8 %v601
        %v603 = vperm.slane %v597, %v602
        %v605 = vunpack.c.l.s4 1934713408
        %v606 = vunpack.c.0.s8 %v605
        %v607 = vperm.slane %v599, %v606
        %v608 = vrot.slane %v603, 4
        %v609 = vsel %vm314, 0, %v608
        %v610 = vrot.slane %v607, 4
        %v611 = vsel %vm314, 0, %v610
        %v614 = vpack.i.b16 %v603, %v575
        %v616 = vshrl.u32 %v575, 16
        %v617 = vshrl.u32 %v603, 16
        %v618 = vpack.i.b16 %v617, %v616
        %v622 = vpack.i.b16 %v609, %v581
        %v624 = vshrl.u32 %v581, 16
        %v625 = vshrl.u32 %v609, 16
        %v626 = vpack.i.b16 %v625, %v624
        %v630 = vpack.i.b16 %v607, %v579
        %v632 = vshrl.u32 %v579, 16
        %v633 = vshrl.u32 %v607, 16
        %v634 = vpack.i.b16 %v633, %v632
        %v638 = vpack.i.b16 %v611, %v583
        %v640 = vshrl.u32 %v583, 16
        %v641 = vshrl.u32 %v611, 16
        %v642 = vpack.i.b16 %v641, %v640
        %644 = vxpose.xlu0.c.b16.start [1/8] %v614, 128
        %645 = vxpose.xlu0.c.b16.cont [2/8] 0, 128
        %646 = vxpose.xlu0.c.b16.cont [3/8] 0, 128
        %647 = vxpose.xlu0.c.b16.cont [4/8] 0, 128
        %648 = vxpose.xlu0.c.b16.cont [5/8] 0, 128
        %649 = vxpose.xlu0.c.b16.cont [6/8] 0, 128
        %650 = vxpose.xlu0.c.b16.cont [7/8] 0, 128
        %651 = vxpose.xlu0.c.b16.end [8/8] 0, 128
        %v652 = vpop.trf.xlu0
        %v653 = vpop.trf.xlu0
        %v654 = vpop.trf.xlu0
        %v655 = vpop.trf.xlu0
        %v656 = vpop.trf.xlu0
        %v657 = vpop.trf.xlu0
        %v658 = vpop.trf.xlu0
        %v659 = vpop.trf.xlu0
        %660 = vxpose.xlu0.c.b16.start [1/8] %v618, 128
        %661 = vxpose.xlu0.c.b16.cont [2/8] 0, 128
        %662 = vxpose.xlu0.c.b16.cont [3/8] 0, 128
        %663 = vxpose.xlu0.c.b16.cont [4/8] 0, 128
        %664 = vxpose.xlu0.c.b16.cont [5/8] 0, 128
        %665 = vxpose.xlu0.c.b16.cont [6/8] 0, 128
        %666 = vxpose.xlu0.c.b16.cont [7/8] 0, 128
        %667 = vxpose.xlu0.c.b16.end [8/8] 0, 128
        %v668 = vpop.trf.xlu0
        %v669 = vpop.trf.xlu0
        %v670 = vpop.trf.xlu0
        %v671 = vpop.trf.xlu0
        %v672 = vpop.trf.xlu0
        %v673 = vpop.trf.xlu0
        %v674 = vpop.trf.xlu0
        %v675 = vpop.trf.xlu0
        %676 = vxpose.xlu0.c.b16.start [1/8] %v622, 128
        %677 = vxpose.xlu0.c.b16.cont [2/8] 0, 128
        %678 = vxpose.xlu0.c.b16.cont [3/8] 0, 128
        %679 = vxpose.xlu0.c.b16.cont [4/8] 0, 128
        %680 = vxpose.xlu0.c.b16.cont [5/8] 0, 128
        %681 = vxpose.xlu0.c.b16.cont [6/8] 0, 128
        %682 = vxpose.xlu0.c.b16.cont [7/8] 0, 128
        %683 = vxpose.xlu0.c.b16.end [8/8] 0, 128
        %v684 = vpop.trf.xlu0
        %v685 = vpop.trf.xlu0
        %v686 = vpop.trf.xlu0
        %v687 = vpop.trf.xlu0
        %v688 = vpop.trf.xlu0
        %v689 = vpop.trf.xlu0
        %v690 = vpop.trf.xlu0
        %v691 = vpop.trf.xlu0
        %692 = vxpose.xlu0.c.b16.start [1/8] %v626, 128
        %693 = vxpose.xlu0.c.b16.cont [2/8] 0, 128
        %694 = vxpose.xlu0.c.b16.cont [3/8] 0, 128
        %695 = vxpose.xlu0.c.b16.cont [4/8] 0, 128
        %696 = vxpose.xlu0.c.b16.cont [5/8] 0, 128
        %697 = vxpose.xlu0.c.b16.cont [6/8] 0, 128
        %698 = vxpose.xlu0.c.b16.cont [7/8] 0, 128
        %699 = vxpose.xlu0.c.b16.end [8/8] 0, 128
        %v700 = vpop.trf.xlu0
        %v701 = vpop.trf.xlu0
        %v702 = vpop.trf.xlu0
        %v703 = vpop.trf.xlu0
        %v704 = vpop.trf.xlu0
        %v705 = vpop.trf.xlu0
        %v706 = vpop.trf.xlu0
        %v707 = vpop.trf.xlu0
        %708 = vxpose.xlu0.c.b16.start [1/8] %v630, 128
        %709 = vxpose.xlu0.c.b16.cont [2/8] 0, 128
        %710 = vxpose.xlu0.c.b16.cont [3/8] 0, 128
        %711 = vxpose.xlu0.c.b16.cont [4/8] 0, 128
        %712 = vxpose.xlu0.c.b16.cont [5/8] 0, 128
        %713 = vxpose.xlu0.c.b16.cont [6/8] 0, 128
        %714 = vxpose.xlu0.c.b16.cont [7/8] 0, 128
        %715 = vxpose.xlu0.c.b16.end [8/8] 0, 128
        %v716 = vpop.trf.xlu0
        %v717 = vpop.trf.xlu0
        %v718 = vpop.trf.xlu0
        %v719 = vpop.trf.xlu0
        %v720 = vpop.trf.xlu0
        %v721 = vpop.trf.xlu0
        %v722 = vpop.trf.xlu0
        %v723 = vpop.trf.xlu0
        %724 = vxpose.xlu0.c.b16.start [1/8] %v634, 128
        %725 = vxpose.xlu0.c.b16.cont [2/8] 0, 128
        %726 = vxpose.xlu0.c.b16.cont [3/8] 0, 128
        %727 = vxpose.xlu0.c.b16.cont [4/8] 0, 128
        %728 = vxpose.xlu0.c.b16.cont [5/8] 0, 128
        %729 = vxpose.xlu0.c.b16.cont [6/8] 0, 128
        %730 = vxpose.xlu0.c.b16.cont [7/8] 0, 128
        %731 = vxpose.xlu0.c.b16.end [8/8] 0, 128
        %v732 = vpop.trf.xlu0
        %v733 = vpop.trf.xlu0
        %v734 = vpop.trf.xlu0
        %v735 = vpop.trf.xlu0
        %v736 = vpop.trf.xlu0
        %v737 = vpop.trf.xlu0
        %v738 = vpop.trf.xlu0
        %v739 = vpop.trf.xlu0
        %740 = vxpose.xlu0.c.b16.start [1/8] %v638, 128
        %741 = vxpose.xlu0.c.b16.cont [2/8] 0, 128
        %742 = vxpose.xlu0.c.b16.cont [3/8] 0, 128
        %743 = vxpose.xlu0.c.b16.cont [4/8] 0, 128
        %744 = vxpose.xlu0.c.b16.cont [5/8] 0, 128
        %745 = vxpose.xlu0.c.b16.cont [6/8] 0, 128
        %746 = vxpose.xlu0.c.b16.cont [7/8] 0, 128
        %747 = vxpose.xlu0.c.b16.end [8/8] 0, 128
        %v748 = vpop.trf.xlu0
        %v749 = vpop.trf.xlu0
        %v750 = vpop.trf.xlu0
        %v751 = vpop.trf.xlu0
        %v752 = vpop.trf.xlu0
        %v753 = vpop.trf.xlu0
        %v754 = vpop.trf.xlu0
        %v755 = vpop.trf.xlu0
        %756 = vxpose.xlu0.c.b16.start [1/8] %v642, 128
        %757 = vxpose.xlu0.c.b16.cont [2/8] 0, 128
        %758 = vxpose.xlu0.c.b16.cont [3/8] 0, 128
        %759 = vxpose.xlu0.c.b16.cont [4/8] 0, 128
        %760 = vxpose.xlu0.c.b16.cont [5/8] 0, 128
        %761 = vxpose.xlu0.c.b16.cont [6/8] 0, 128
        %762 = vxpose.xlu0.c.b16.cont [7/8] 0, 128
        %763 = vxpose.xlu0.c.b16.end [8/8] 0, 128
        %v764 = vpop.trf.xlu0
        %v765 = vpop.trf.xlu0
        %v766 = vpop.trf.xlu0
        %v767 = vpop.trf.xlu0
        %v768 = vpop.trf.xlu0
        %v769 = vpop.trf.xlu0
        %v770 = vpop.trf.xlu0
        %v771 = vpop.trf.xlu0
        %v772 = vrot.slane %v716, 4
        %v773 = vsel %vm314, %v772, %v652
        %v775 = vunpack.c.l.s4 1983009808
        %v776 = vunpack.c.0.s8 %v775
        %v777 = vperm.slane %v773, %v776
        %v778 = vrot.slane %v748, 4
        %v779 = vsel %vm314, %v778, %v684
        %v781 = vunpack.c.l.s4 1983009808
        %v782 = vunpack.c.0.s8 %v781
        %v783 = vperm.slane %v779, %v782
        %v784 = vrot.slane %v783, 4
        %v785 = vsel %vm314, %v784, %v777
        %v787 = vunpack.c.l.s4 1934713408
        %v788 = vunpack.c.0.s8 %v787
        %v789 = vperm.slane %v785, %v788
        %v790 = vrot.slane %v789, 4
        %v791 = vsel %vm314, 0, %v790
        %v792 = vrot.slane %v732, 4
        %v793 = vsel %vm314, %v792, %v668
        %v795 = vunpack.c.l.s4 1983009808
        %v796 = vunpack.c.0.s8 %v795
        %v797 = vperm.slane %v793, %v796
        %v798 = vrot.slane %v764, 4
        %v799 = vsel %vm314, %v798, %v700
        %v801 = vunpack.c.l.s4 1983009808
        %v802 = vunpack.c.0.s8 %v801
        %v803 = vperm.slane %v799, %v802
        %v804 = vrot.slane %v803, 4
        %v805 = vsel %vm314, %v804, %v797
        %v807 = vunpack.c.l.s4 1934713408
        %v808 = vunpack.c.0.s8 %v807
        %v809 = vperm.slane %v805, %v808
        %v810 = vrot.slane %v809, 4
        %v811 = vsel %vm314, 0, %v810
        %v814 = vpack.i.b16 %v809, %v789
        %v816 = vshrl.u32 %v789, 16
        %v817 = vshrl.u32 %v809, 16
        %v818 = vpack.i.b16 %v817, %v816
        %v822 = vpack.i.b16 %v811, %v791
        %v824 = vshrl.u32 %v791, 16
        %v825 = vshrl.u32 %v811, 16
        %v826 = vpack.i.b16 %v825, %v824
        %vm828 = vcmask 60416
        %829 = vst.msk [vmem:[%s235] sm:$0xf] %vm828, %v814
        %830 = vst.msk [vmem:[%s235 + $0x4] sm:$0xf] %vm828, %v818
        %831 = vst.msk [vmem:[%s235 + $0x8] sm:$0xf] %vm828, %v822
        %832 = vst.msk [vmem:[%s235 + $0xc] sm:$0xf] %vm828, %v826
        %v833 = vsel %vm314, %v400, %v393
        %v835 = vunpack.c.l.s4 1983009808
        %v836 = vunpack.c.0.s8 %v835
        %v837 = vperm.slane %v833, %v836
        %v838 = vrot.slane %v401, 4
        %v839 = vsel %vm314, %v838, %v399
        %v841 = vunpack.c.l.s4 1983009808
        %v842 = vunpack.c.0.s8 %v841
        %v843 = vperm.slane %v839, %v842
        %v844 = vrot.slane %v843, 4
        %v845 = vsel %vm314, %v844, %v837
        %v847 = vunpack.c.l.s4 1934713408
        %v848 = vunpack.c.0.s8 %v847
        %v849 = vperm.slane %v845, %v848
        %v850 = vrot.slane %v849, 4
        %v851 = vsel %vm314, 0, %v850
        %v852 = vsel %vm314, %v426, %v419
        %v854 = vunpack.c.l.s4 1983009808
        %v855 = vunpack.c.0.s8 %v854
        %v856 = vperm.slane %v852, %v855
        %v857 = vrot.slane %v427, 4
        %v858 = vsel %vm314, %v857, %v425
        %v860 = vunpack.c.l.s4 1983009808
        %v861 = vunpack.c.0.s8 %v860
        %v862 = vperm.slane %v858, %v861
        %v863 = vrot.slane %v862, 4
        %v864 = vsel %vm314, %v863, %v856
        %v866 = vunpack.c.l.s4 1934713408
        %v867 = vunpack.c.0.s8 %v866
        %v868 = vperm.slane %v864, %v867
        %v869 = vrot.slane %v868, 4
        %v870 = vsel %vm314, 0, %v869
        %v873 = vpack.i.b16 %v868, %v849
        %v875 = vshrl.u32 %v849, 16
        %v876 = vshrl.u32 %v868, 16
        %v877 = vpack.i.b16 %v876, %v875
        %v881 = vpack.i.b16 %v870, %v851
        %v883 = vshrl.u32 %v851, 16
        %v884 = vshrl.u32 %v870, 16
        %v885 = vpack.i.b16 %v884, %v883
        %887 = vst.msk [vmem:[%s242] sm:$0xf] %vm828, %v873
        %888 = vst.msk [vmem:[%s242 + $0x4] sm:$0xf] %vm828, %v877
        %889 = vst.msk [vmem:[%s242 + $0x8] sm:$0xf] %vm828, %v881
        %890 = vst.msk [vmem:[%s242 + $0xc] sm:$0xf] %vm828, %v885
        %s891 = sand.u32 %s102, 1
        %s892 = scalar_lea.sflag [#allocation4], %s891
        %s893 = sand.u32 %s102, 1
        %s894 = smul.addr %s893, 16
        %s895 = scalar_lea.vmem [#allocation7], %s894
        %s896 = sand.u32 %s128, 1
        %s897 = scalar_lea.sflag [#allocation9], %s896
        %s898 = sand.u32 %s128, 1
        %s899 = smul.addr %s898, 16
        %s900 = scalar_lea.vmem [#allocation8], %s899
        // Predicated region
        $region41: #{tpu_custom_call.1} parent=31 // pred_check
          %p901 = pneg %p112
        $region42: #{tpu_custom_call.1} parent=31 // pred_check_branch
          %903 = sbr.rel (%p901) target = $region44
        $region43: #{tpu_custom_call.1} parent=31 // pred_region
          %905 = vsyncadd %s892, 0
          %s906 = smul.addr %s26, 4
          %s907 = smul.addr %s906, 4
          %s908 = scalar_lea.hbm %s3, %s907
          %s909 = sshll.u32 %s895, 4
          %s910 = int_to_ptr.vmem [resolvable:$true] %s909
          %s911 = sshll.u32 %s908, 4
          %s912 = int_to_ptr.hbm [resolvable:$true] %s911
          %917 = dma.vmem_to_hbm [thread:$0]  %s910, 256, %s912, %s892, 64, 64, 4
        $region44: #{tpu_custom_call.1} parent=31 // pred_fallthru
          _
        // Predicated region
        $region45: #{tpu_custom_call.1} parent=31 // pred_check
          %p918 = pneg %p138
        $region46: #{tpu_custom_call.1} parent=31 // pred_check_branch
          %920 = sbr.rel (%p918) target = $region48
        $region47: #{tpu_custom_call.1} parent=31 // pred_region
          %922 = vsyncadd %s897, 0
          %s923 = smul.addr %s26, 4
          %s924 = smul.addr %s923, 4
          %s925 = scalar_lea.hbm %s4, %s924
          %s926 = sshll.u32 %s900, 4
          %s927 = int_to_ptr.vmem [resolvable:$true] %s926
          %s928 = sshll.u32 %s925, 4
          %s929 = int_to_ptr.hbm [resolvable:$true] %s928
          %934 = dma.vmem_to_hbm [thread:$0]  %s927, 256, %s929, %s897, 64, 64, 4
        $region48: #{tpu_custom_call.1} parent=31 // pred_fallthru
          _
      $region32: #{tpu_custom_call.1} parent=5 // pred_fallthru
        _
      %p935 = scmp.le.s32.totalorder 2, %s21
      // Predicated region
      $region49: #{tpu_custom_call.1} parent=5 // pred_check
        %p936 = pneg %p935
      $region50: #{tpu_custom_call.1} parent=5 // pred_check_branch
        %938 = sbr.rel (%p936) target = $region52
      $region51: #{tpu_custom_call.1} parent=5 // pred_region
        %s939 = ssub.s32 %s21, 2
        // Predicated region
        $region53: #{tpu_custom_call.1} parent=51 // pred_check
          %p940 = pneg %p118
        $region54: #{tpu_custom_call.1} parent=51 // pred_check_branch
          %942 = sbr.rel (%p940) target = $region56
        $region55: #{tpu_custom_call.1} parent=51 // pred_region
          %s943 = sand.u32 %s103, 1
          %s944 = scalar_lea.sflag [#allocation4], %s943
          %s945 = sand.u32 %s103, 1
          %s946 = smul.addr %s945, 16
          %s947 = scalar_lea.vmem [#allocation7], %s946
          %949 = dma.done %s944, 256
        $region56: #{tpu_custom_call.1} parent=51 // pred_fallthru
          _
        // Predicated region
        $region57: #{tpu_custom_call.1} parent=51 // pred_check
          %p950 = pneg %p144
        $region58: #{tpu_custom_call.1} parent=51 // pred_check_branch
          %952 = sbr.rel (%p950) target = $region60
        $region59: #{tpu_custom_call.1} parent=51 // pred_region
          %s953 = sand.u32 %s129, 1
          %s954 = scalar_lea.sflag [#allocation9], %s953
          %s955 = sand.u32 %s129, 1
          %s956 = smul.addr %s955, 16
          %s957 = scalar_lea.vmem [#allocation8], %s956
          %959 = dma.done %s954, 256
        $region60: #{tpu_custom_call.1} parent=51 // pred_fallthru
          _
      $region52: #{tpu_custom_call.1} parent=5 // pred_fallthru
        _
    $region6: #{tpu_custom_call.1} parent=1 // loop_footer
      %s25 = sadd.s32 1, %s21
    $region7: #{tpu_custom_call.1} parent=1 // loop_footer_branch
      %20 = sbr.rel target = $region3
    $region8: #{tpu_custom_call.1} parent=1 // loop_exit
      _
    %960 = vsyncpa [#allocation3], 1
    %s961 = scalar_lea.sflag [#allocation3], 1
    %962 = vsyncpa %s961, 1
    %963 = vsyncpa [#allocation6], 1
    %964 = vsyncpa [#allocation4], 1
    %s965 = scalar_lea.sflag [#allocation4], 1
    %966 = vsyncpa %s965, 1
    %967 = vsyncpa [#allocation9], 1
    %s968 = scalar_lea.sflag [#allocation9], 1
    %969 = vsyncpa %s968, 1

</llo_original>
